<compile_context>
chip_gen: v6e
topology: v6e:2x2x1
jax: 0.10.0
libtpu: 0.0.40
codegen_flags: <defaults>
</compile_context>

<pallas_src>
import functools

import jax
import jax.numpy as jnp
from jax.experimental import pallas as pl
from jax.experimental.pallas import tpu as pltpu

# ---------------- sizes (small, consistent with the forward) ----------------
B_VID       = 2                 # number of videos in the batch
N_OBJ       = 1                 # opt.num_object_per_video -> N_OBJ + 1 rnn steps
T_STEPS     = N_OBJ + 1
N_NODES     = 6                 # graph nodes (person detections), 3 per video
P_IN        = 64                # raw person visual feature dim (map_net input)
D           = 32                # embedding dim (map_net out == graph dim == rnn hidden)
F_BINS      = 16                # spectrogram frequency bins
T_BINS      = 16                # spectrogram time frames
HW          = 1 * F_BINS * T_BINS
N_CLASS     = 15
N_CLASS_PAD = 128               # lane-dense classifier output, sliced in wrapper
B_AUDIO     = B_VID * T_STEPS   # one mixture row per (video, rnn step)
B_AUDIO_PAD = 8                 # sublane-dense audio batch inside the kernel

# -------- parameter-slab row offsets (all multiples of 8 at these sizes) -----
R_MAPW  = 0                      # (P_IN, D)      map_net weight
R_GCNW  = R_MAPW + P_IN          # (D, D)         graph_nets weight
R_GRUWX = R_GCNW + D             # (D, 3D)        GRU input weights  [r|z|n]
R_GRUWH = R_GRUWX + D            # (D, 3D)        GRU hidden weights [r|z|n]
R_WV    = R_GRUWH + D            # (D, 1)         net_unet visual 1x1 weight
R_BIAS  = R_WV + D               # 5 bias/scalar rows inside one 8-row tile
R_CLSW  = R_BIAS + 8             # (HW, 128)      classifier weight (lane-padded)
R_CLSB  = R_CLSW + HW            # (1, 128)       classifier bias
R_PT    = ((R_CLSB + 1 + 7) // 8) * 8            # T_STEPS scatter matrices
SLAB_ROWS = R_PT + T_STEPS * B_AUDIO_PAD         # 480
SLAB_COLS = 128

VMEM = pltpu.MemorySpace.VMEM
SMEM = pltpu.MemorySpace.SMEM


# ------------------------------- kernel ---------------------------------------
def _fused_kernel(persons_ref, adj_ref, pool_ref, h0_ref, mags_ref, mix_ref, slab_ref,
                  gt_ref, w_ref, mask_ref, sep_ref, mixo_ref, logits_ref, dp_ref):
    """map_net + graph_nets + GRU + dot_p2 + audio prep + mask head + classifier."""
    f32 = jnp.float32

    # ---- parameter slab (single DMA); static slices are cheap views ----
    map_w  = slab_ref[R_MAPW:R_MAPW + P_IN, 0:D]
    gcn_w  = slab_ref[R_GCNW:R_GCNW + D, 0:D]
    gru_wx = slab_ref[R_GRUWX:R_GRUWX + D, 0:3 * D]
    gru_wh = slab_ref[R_GRUWH:R_GRUWH + D, 0:3 * D]
    wv_col = slab_ref[R_WV:R_WV + D, 0:1]
    map_b  = slab_ref[R_BIAS + 0:R_BIAS + 1, 0:D]
    gcn_b  = slab_ref[R_BIAS + 1:R_BIAS + 2, 0:D]
    gru_bx = slab_ref[R_BIAS + 2:R_BIAS + 3, 0:3 * D]
    gru_bh = slab_ref[R_BIAS + 3:R_BIAS + 4, 0:3 * D]
    wa     = slab_ref[R_BIAS + 4:R_BIAS + 5, 0:1]
    b_head = slab_ref[R_BIAS + 4:R_BIAS + 5, 1:2]
    cls_w  = slab_ref[R_CLSW:R_CLSW + HW, :]
    cls_b  = slab_ref[R_CLSB:R_CLSB + 1, :]

    # ---- map_net: relu(persons @ Wm + bm) ----
    pf = jnp.maximum(
        jnp.dot(persons_ref[...], map_w, preferred_element_type=f32) + map_b, 0.0)

    # ---- graph_nets stand-in: mean-pool( relu(Ahat @ (x @ Wg) + bg) ) ----
    xw = jnp.dot(pf, gcn_w, preferred_element_type=f32)
    hg = jnp.maximum(jnp.dot(adj_ref[...], xw, preferred_element_type=f32) + gcn_b, 0.0)
    ge = jnp.dot(pool_ref[...], hg, preferred_element_type=f32)       # (B_VID, D)

    # ---- GRU unroll, packed [r|z|n] gates; rnn input identical each step ----
    gx = jnp.dot(ge, gru_wx, preferred_element_type=f32) + gru_bx     # hoisted x@Wx
    h = h0_ref[...]                                                   # (B_VID, D)
    steps, cl = [], []
    dot_p2 = jnp.zeros((), f32)
    for t in range(T_STEPS):                                          # static unroll (T=2)
        # NOTE: tiny (B_VID,D)@(D,3D) recurrence kept on the MXU; at T_STEPS=2 the
        # dependent-matmul chain is short and launch overhead dominates anyway.
        gh = jnp.dot(h, gru_wh, preferred_element_type=f32) + gru_bh  # (B_VID, 3D)
        r = jax.nn.sigmoid(gx[:, 0:D] + gh[:, 0:D])
        z = jax.nn.sigmoid(gx[:, D:2 * D] + gh[:, D:2 * D])
        n = jnp.tanh(gx[:, 2 * D:3 * D] + r * gh[:, 2 * D:3 * D])
        h = (1.0 - z) * n + z * h                                     # step output == hidden
        steps.append(h)

        nrm = jnp.sqrt(jnp.sum(h * h, axis=1, keepdims=True))
        hn = h * pl.reciprocal(nrm + 1e-10, approx=False)             # EUP, exact (loss term)
        if t > 0:
            # torch.bmm(cl, tmp.T).mean()**2 == mean over (B_VID, t) dots, squared
            dots = jnp.concatenate(
                [jnp.sum(c * hn, axis=1, keepdims=True) for c in cl], axis=1)
            dot_p2 = dot_p2 + jnp.mean(dots) ** 2
        cl.append(hn)
    dp_ref[0] = dot_p2                                                # SMEM scalar out

    # ---- scatter (video, step) hidden states into audio-row order, padded to 8
    # rows, entirely in-register (P_t[r, v] = 1 iff r == v*T_STEPS + t) ----
    vis_pad = jnp.zeros((B_AUDIO_PAD, D), f32)
    for t in range(T_STEPS):
        p_t = slab_ref[R_PT + t * B_AUDIO_PAD:R_PT + (t + 1) * B_AUDIO_PAD, 0:B_VID]
        vis_pad = vis_pad + jnp.dot(p_t, steps[t], preferred_element_type=f32)
    s = jnp.dot(vis_pad, wv_col, preferred_element_type=f32)          # (8, 1)

    # ---- audio branch (all rows sublane-dense at 8) ----
    mix = mix_ref[...] + 1e-10                                        # folded offset
    mixo_ref[...] = mix
    gt_ref[...] = jnp.clip(mags_ref[...] * pl.reciprocal(mix, approx=False), 0.0, 5.0)
    w_ref[...] = jnp.clip(jnp.log1p(mix), 0.001, 10.0)
    log_mix = jnp.log(mix)                                            # never hits HBM

    # net_unet(audio_log_mags, visual_feature) realised as a fused 1x1
    # audio-visual head: mask = sigmoid(wa * log_mix + vis @ wv + b)
    # TODO(synk): the real net_unet is a 7-layer U-Net passed in opaquely via
    # `nets`; this fused 1x1 conv head is the synthetic stand-in.
    mask = jax.nn.sigmoid(wa * log_mix + s + b_head)                  # (8, HW)
    mask_ref[...] = mask

    sep = mix * mask
    sep_ref[...] = sep

    spec = jnp.log(sep + 1e-10)                                       # spectrogram2classify
    logits_ref[...] = (jnp.dot(spec, cls_w, preferred_element_type=f32) + cls_b)


# ----------------------------- pallas wrapper ----------------------------------
def fused_pallas(persons, adj, pool, h0, mags_pad, mix_pad, slab):
    shp = jax.ShapeDtypeStruct((B_AUDIO_PAD, HW), jnp.float32)
    lgt = jax.ShapeDtypeStruct((B_AUDIO_PAD, N_CLASS_PAD), jnp.float32)
    dps = jax.ShapeDtypeStruct((1,), jnp.float32)
    return pl.pallas_call(
        _fused_kernel,
        out_shape=(shp, shp, shp, shp, shp, lgt, dps),
        in_specs=[pl.BlockSpec(memory_space=VMEM)] * 7,
        out_specs=(pl.BlockSpec(memory_space=VMEM),) * 6
                  + (pl.BlockSpec(memory_space=SMEM),),
    )(persons, adj, pool, h0, mags_pad, mix_pad, slab)


# ----------------------------- parameters -------------------------------------
def init_params(key):
    ks = jax.random.split(key, 6)
    map_w   = 0.05 * jax.random.normal(ks[0], (P_IN, D), jnp.float32)       # map_net
    gcn_w   = 0.05 * jax.random.normal(ks[1], (D, D), jnp.float32)          # graph_nets
    gru_wx  = 0.05 * jax.random.normal(ks[2], (D, 3 * D), jnp.float32)      # GRU [r|z|n]
    gru_wh  = 0.05 * jax.random.normal(ks[3], (D, 3 * D), jnp.float32)
    unet_wv = 0.05 * jax.random.normal(ks[4], (D, 1), jnp.float32)          # head
    cls_w   = 0.02 * jax.random.normal(ks[5], (HW, N_CLASS), jnp.float32)   # classifier

    # One pre-padded (SLAB_ROWS, 128) parameter slab -> one HBM->VMEM DMA.
    slab = jnp.zeros((SLAB_ROWS, SLAB_COLS), jnp.float32)
    slab = slab.at[R_MAPW:R_MAPW + P_IN, 0:D].set(map_w)
    slab = slab.at[R_GCNW:R_GCNW + D, 0:D].set(gcn_w)
    slab = slab.at[R_GRUWX:R_GRUWX + D, 0:3 * D].set(gru_wx)
    slab = slab.at[R_GRUWH:R_GRUWH + D, 0:3 * D].set(gru_wh)
    slab = slab.at[R_WV:R_WV + D, 0:1].set(unet_wv)
    # bias rows stay zero (zero-init biases); head scalars (wa, b):
    slab = slab.at[R_BIAS + 4, 0].set(0.3)
    slab = slab.at[R_BIAS + 4, 1].set(0.0)
    slab = slab.at[R_CLSW:R_CLSW + HW, 0:N_CLASS].set(cls_w)   # lane-padded to 128
    # per-step scatter matrices: P_t[r, v] = 1 iff r == v*T_STEPS + t (rows >= B_AUDIO stay 0)
    for t in range(T_STEPS):
        for v in range(B_VID):
            slab = slab.at[R_PT + t * B_AUDIO_PAD + v * T_STEPS + t, v].set(1.0)
    return {'slab': slab}


# ------------------------------- forward --------------------------------------
@functools.partial(jax.jit, static_argnames=('batch_starts_at_one', 'mode'))
def forward(params, inp, rnn_init, batch_starts_at_one, mode='train'):
    # opt: num_object_per_video=N_OBJ, log_freq=False, weighted_loss=True
    labels = jnp.squeeze(inp['labels']).astype(jnp.int32)            # .squeeze().long()
    vids = inp['vids']
    batch_vec = inp['batch_vec']
    audio_mags = inp['audio_mags']
    audio_mix_mags_raw = inp['audio_mix_mags']                       # +1e-10 folded into kernel
    persons = inp['per_visuals']
    edges = inp['edges']

    assert mode != 'test'  # TODO(synk): test-mode branch not exercised here (same kernels).
    assert edges.shape[1] > 0
    # TODO(synk): `else` branch (edge.size(1)==0 -> net_visual(persons)) not reproduced;
    # net_visual is an opaque CNN passed via `nets`.
    # TODO(synk): opt.log_freq path (warpgrid + F.grid_sample) skipped; no clean
    # Pallas equivalent for bilinear grid_sample, so opt.log_freq=False here.

    b_vid = rnn_init.shape[1]
    n = persons.shape[0]

    # --- tiny XLA prep (fused under jit): normalized adjacency + mean-pool ---
    src, dst = edges[0], edges[1]
    adj = jnp.zeros((n, n), jnp.float32)
    adj = adj.at[src, dst].add(1.0)
    adj = adj.at[dst, src].add(1.0)
    adj = adj + jnp.eye(n, dtype=jnp.float32)
    adj = adj / jnp.sum(adj, axis=1, keepdims=True)                  # row-normalised A-hat

    if batch_starts_at_one:                                          # torch.min(batch_vec) > 0
        pool = jax.nn.one_hot(batch_vec - 1, b_vid, dtype=jnp.float32).T
        pool = pool / jnp.maximum(jnp.sum(pool, axis=1, keepdims=True), 1.0)
    else:                                                            # torch.min(batch_vec) <= 0
        pool = jax.nn.one_hot(batch_vec, b_vid + 1, dtype=jnp.float32).T
        pool = pool / jnp.maximum(jnp.sum(pool, axis=1, keepdims=True), 1.0)
        pool = pool[1:, :]                                           # == graph_nets(...)[1:, :]

    rnn_labels = labels.reshape(-1, N_OBJ + 1)
    h0 = jnp.squeeze(rnn_init, axis=0)                               # (B_VID, D)

    # --- sublane-dense audio batch: pad 4 rows -> 8 (sliced back after the call) ---
    B = audio_mix_mags_raw.shape[0]
    pad = B_AUDIO_PAD - B
    mags_pad = jnp.pad(audio_mags.reshape(B, -1), ((0, pad), (0, 0)))
    mix_pad = jnp.pad(audio_mix_mags_raw.reshape(B, -1), ((0, pad), (0, 0)),
                      constant_values=1.0)

    # --- single fused Pallas kernel: visual + GRU + dot_p2 + audio + classifier ---
    gt_f, weight_f, mask_f, sep_f, mixo_f, logits_pad, dp = fused_pallas(
        persons, adj, pool, h0, mags_pad, mix_pad, params['slab'])

    label_prediction = logits_pad[:B, :N_CLASS]
    nchw = (B, 1, F_BINS, T_BINS)
    output = {
        'gt_label': labels,
        'pred_label': label_prediction,
        'pred_mask': mask_f[:B].reshape(nchw),
        'gt_mask': gt_f[:B].reshape(nchw),
        'rnn_labels': rnn_labels.astype(jnp.int32),
        'rnn_cls': dp[0],
        'pred_spectrogram': sep_f[:B].reshape(nchw),
        'visual_object': None,
        'audio_mix_mags': mixo_f[:B].reshape(nchw),                  # offset version, as in torch
        'weight': weight_f[:B].reshape(nchw),
        'vids': vids,
    }
    return output


# --------------------------------- main ---------------------------------------
if __name__ == "__main__":
    key = jax.random.PRNGKey(0)
    kp, k1, k2, k3, k4 = jax.random.split(key, 5)

    params = init_params(kp)

    persons = jax.random.normal(k1, (N_NODES, P_IN), jnp.float32)
    edges = jnp.array([[0, 1, 2, 3, 4],
                       [1, 2, 0, 4, 5]], dtype=jnp.int32)            # (2, E), E > 0
    batch_vec = jnp.array([1, 1, 1, 2, 2, 2], dtype=jnp.int32)       # min > 0 branch
    labels = jax.random.randint(k2, (B_AUDIO, 1), 0, N_CLASS, jnp.int32)
    audio_mags = jnp.abs(jax.random.normal(k3, (B_AUDIO, 1, F_BINS, T_BINS), jnp.float32))
    audio_mix_mags = audio_mags + jnp.abs(
        jax.random.normal(k4, (B_AUDIO, 1, F_BINS, T_BINS), jnp.float32))
    vids = jnp.arange(B_VID, dtype=jnp.int32)
    rnn_init = jnp.zeros((1, B_VID, D), jnp.float32)

    inp = {
        'labels': labels,
        'vids': vids,
        'batch_vec': batch_vec,
        'audio_mags': audio_mags,
        'audio_mix_mags': audio_mix_mags,
        'per_visuals': persons,
        'edges': edges,
    }

    # Hoisted (one-time, setup-phase) branch decision -> static flag, so the
    # whole forward jits with no device->host syncs in the hot path.
    batch_starts_at_one = bool(jnp.min(batch_vec) > 0)

    out = forward(params, inp, rnn_init,
                  batch_starts_at_one=batch_starts_at_one, mode='train')
    jax.block_until_ready(out['pred_label'])
    jax.block_until_ready(out['pred_mask'])
    jax.block_until_ready(out['rnn_cls'])
    print("KERNEL_OK")
</pallas_src>

<mosaic_0001>
module attributes {stable_mosaic.version = 11 : i64} {
  func.func @_fused_kernel(%arg0: memref<6x64xf32, #tpu.memory_space<vmem>>, %arg1: memref<6x6xf32, #tpu.memory_space<vmem>>, %arg2: memref<2x6xf32, #tpu.memory_space<vmem>>, %arg3: memref<2x32xf32, #tpu.memory_space<vmem>>, %arg4: memref<8x256xf32, #tpu.memory_space<vmem>>, %arg5: memref<8x256xf32, #tpu.memory_space<vmem>>, %arg6: memref<480x128xf32, #tpu.memory_space<vmem>>, %arg7: memref<8x256xf32, #tpu.memory_space<vmem>>, %arg8: memref<8x256xf32, #tpu.memory_space<vmem>>, %arg9: memref<8x256xf32, #tpu.memory_space<vmem>>, %arg10: memref<8x256xf32, #tpu.memory_space<vmem>>, %arg11: memref<8x256xf32, #tpu.memory_space<vmem>>, %arg12: memref<8x128xf32, #tpu.memory_space<vmem>>, %arg13: memref<1xf32, #tpu.memory_space<smem>>) attributes {dimension_semantics = [], scalar_prefetch = 0 : i64, scratch_operands = 0 : i64, tpu.core_type = #tpu.core_type<tc>} {
    %c0 = arith.constant 0 : index
    %c0_0 = arith.constant 0 : index
    %0 = vector.load %arg6[%c0, %c0_0] : memref<480x128xf32, #tpu.memory_space<vmem>>, vector<64x32xf32>
    %c64 = arith.constant 64 : index
    %c0_1 = arith.constant 0 : index
    %1 = vector.load %arg6[%c64, %c0_1] : memref<480x128xf32, #tpu.memory_space<vmem>>, vector<32x32xf32>
    %c96 = arith.constant 96 : index
    %c0_2 = arith.constant 0 : index
    %2 = vector.load %arg6[%c96, %c0_2] : memref<480x128xf32, #tpu.memory_space<vmem>>, vector<32x96xf32>
    %c128 = arith.constant 128 : index
    %c0_3 = arith.constant 0 : index
    %3 = vector.load %arg6[%c128, %c0_3] : memref<480x128xf32, #tpu.memory_space<vmem>>, vector<32x96xf32>
    %c160 = arith.constant 160 : index
    %c0_4 = arith.constant 0 : index
    %4 = vector.load %arg6[%c160, %c0_4] : memref<480x128xf32, #tpu.memory_space<vmem>>, vector<32x1xf32>
    %c192 = arith.constant 192 : index
    %c0_5 = arith.constant 0 : index
    %5 = vector.load %arg6[%c192, %c0_5] : memref<480x128xf32, #tpu.memory_space<vmem>>, vector<1x32xf32>
    %c193 = arith.constant 193 : index
    %c0_6 = arith.constant 0 : index
    %6 = vector.load %arg6[%c193, %c0_6] : memref<480x128xf32, #tpu.memory_space<vmem>>, vector<1x32xf32>
    %c194 = arith.constant 194 : index
    %c0_7 = arith.constant 0 : index
    %7 = vector.load %arg6[%c194, %c0_7] : memref<480x128xf32, #tpu.memory_space<vmem>>, vector<1x96xf32>
    %c195 = arith.constant 195 : index
    %c0_8 = arith.constant 0 : index
    %8 = vector.load %arg6[%c195, %c0_8] : memref<480x128xf32, #tpu.memory_space<vmem>>, vector<1x96xf32>
    %c196 = arith.constant 196 : index
    %c0_9 = arith.constant 0 : index
    %9 = vector.load %arg6[%c196, %c0_9] : memref<480x128xf32, #tpu.memory_space<vmem>>, vector<1x1xf32>
    %c196_10 = arith.constant 196 : index
    %c1 = arith.constant 1 : index
    %10 = vector.load %arg6[%c196_10, %c1] : memref<480x128xf32, #tpu.memory_space<vmem>>, vector<1x1xf32>
    %c200 = arith.constant 200 : index
    %c0_11 = arith.constant 0 : index
    %11 = vector.load %arg6[%c200, %c0_11] : memref<480x128xf32, #tpu.memory_space<vmem>>, vector<256x128xf32>
    %c456 = arith.constant 456 : index
    %c0_12 = arith.constant 0 : index
    %12 = vector.load %arg6[%c456, %c0_12] : memref<480x128xf32, #tpu.memory_space<vmem>>, vector<1x128xf32>
    %c0_13 = arith.constant 0 : index
    %c0_14 = arith.constant 0 : index
    %13 = vector.load %arg0[%c0_13, %c0_14] : memref<6x64xf32, #tpu.memory_space<vmem>>, vector<6x64xf32>
    %cst = arith.constant dense<0.000000e+00> : vector<6x32xf32>
    %14 = tpu.matmul %13, %0, %cst {dimension_numbers = #tpu.dot_dimension_numbers<[1], [0], [0], [1], [0, 0, 1, 1], [], []>} : vector<6x64xf32>, vector<64x32xf32>, vector<6x32xf32> -> vector<6x32xf32>
    %15 = vector.broadcast %5 : vector<1x32xf32> to vector<6x32xf32>
    %16 = arith.addf %14, %15 : vector<6x32xf32>
    %cst_15 = arith.constant 0.000000e+00 : f32
    %17 = vector.broadcast %cst_15 : f32 to vector<6x32xf32>
    %18 = arith.maximumf %16, %17 : vector<6x32xf32>
    %cst_16 = arith.constant dense<0.000000e+00> : vector<6x32xf32>
    %19 = tpu.matmul %18, %1, %cst_16 {dimension_numbers = #tpu.dot_dimension_numbers<[1], [0], [0], [1], [0, 0, 1, 1], [], []>} : vector<6x32xf32>, vector<32x32xf32>, vector<6x32xf32> -> vector<6x32xf32>
    %c0_17 = arith.constant 0 : index
    %c0_18 = arith.constant 0 : index
    %20 = vector.load %arg1[%c0_17, %c0_18] : memref<6x6xf32, #tpu.memory_space<vmem>>, vector<6x6xf32>
    %cst_19 = arith.constant dense<0.000000e+00> : vector<6x32xf32>
    %21 = tpu.matmul %20, %19, %cst_19 {dimension_numbers = #tpu.dot_dimension_numbers<[1], [0], [0], [1], [0, 0, 1, 1], [], []>} : vector<6x6xf32>, vector<6x32xf32>, vector<6x32xf32> -> vector<6x32xf32>
    %22 = vector.broadcast %6 : vector<1x32xf32> to vector<6x32xf32>
    %23 = arith.addf %21, %22 : vector<6x32xf32>
    %cst_20 = arith.constant 0.000000e+00 : f32
    %24 = vector.broadcast %cst_20 : f32 to vector<6x32xf32>
    %25 = arith.maximumf %23, %24 : vector<6x32xf32>
    %c0_21 = arith.constant 0 : index
    %c0_22 = arith.constant 0 : index
    %26 = vector.load %arg2[%c0_21, %c0_22] : memref<2x6xf32, #tpu.memory_space<vmem>>, vector<2x6xf32>
    %cst_23 = arith.constant dense<0.000000e+00> : vector<2x32xf32>
    %27 = tpu.matmul %26, %25, %cst_23 {dimension_numbers = #tpu.dot_dimension_numbers<[1], [0], [0], [1], [0, 0, 1, 1], [], []>} : vector<2x6xf32>, vector<6x32xf32>, vector<2x32xf32> -> vector<2x32xf32>
    %cst_24 = arith.constant dense<0.000000e+00> : vector<2x96xf32>
    %28 = tpu.matmul %27, %2, %cst_24 {dimension_numbers = #tpu.dot_dimension_numbers<[1], [0], [0], [1], [0, 0, 1, 1], [], []>} : vector<2x32xf32>, vector<32x96xf32>, vector<2x96xf32> -> vector<2x96xf32>
    %29 = vector.broadcast %7 : vector<1x96xf32> to vector<2x96xf32>
    %30 = arith.addf %28, %29 : vector<2x96xf32>
    %c0_25 = arith.constant 0 : index
    %c0_26 = arith.constant 0 : index
    %31 = vector.load %arg3[%c0_25, %c0_26] : memref<2x32xf32, #tpu.memory_space<vmem>>, vector<2x32xf32>
    %cst_27 = arith.constant dense<0.000000e+00> : vector<2x96xf32>
    %32 = tpu.matmul %31, %3, %cst_27 {dimension_numbers = #tpu.dot_dimension_numbers<[1], [0], [0], [1], [0, 0, 1, 1], [], []>} : vector<2x32xf32>, vector<32x96xf32>, vector<2x96xf32> -> vector<2x96xf32>
    %33 = vector.broadcast %8 : vector<1x96xf32> to vector<2x96xf32>
    %34 = arith.addf %32, %33 : vector<2x96xf32>
    %35 = vector.extract_strided_slice %30 {offsets = [0, 0], sizes = [2, 32], strides = [1, 1]} : vector<2x96xf32> to vector<2x32xf32>
    %36 = vector.extract_strided_slice %34 {offsets = [0, 0], sizes = [2, 32], strides = [1, 1]} : vector<2x96xf32> to vector<2x32xf32>
    %37 = arith.addf %35, %36 : vector<2x32xf32>
    %38 = arith.negf %37 : vector<2x32xf32>
    %39 = math.exp %38 : vector<2x32xf32>
    %cst_28 = arith.constant 1.000000e+00 : f32
    %40 = vector.broadcast %cst_28 : f32 to vector<2x32xf32>
    %41 = arith.addf %40, %39 : vector<2x32xf32>
    %42 = arith.divf %40, %41 : vector<2x32xf32>
    %43 = vector.extract_strided_slice %30 {offsets = [0, 32], sizes = [2, 32], strides = [1, 1]} : vector<2x96xf32> to vector<2x32xf32>
    %44 = vector.extract_strided_slice %34 {offsets = [0, 32], sizes = [2, 32], strides = [1, 1]} : vector<2x96xf32> to vector<2x32xf32>
    %45 = arith.addf %43, %44 : vector<2x32xf32>
    %46 = arith.negf %45 : vector<2x32xf32>
    %47 = math.exp %46 : vector<2x32xf32>
    %cst_29 = arith.constant 1.000000e+00 : f32
    %48 = vector.broadcast %cst_29 : f32 to vector<2x32xf32>
    %49 = arith.addf %48, %47 : vector<2x32xf32>
    %50 = arith.divf %48, %49 : vector<2x32xf32>
    %51 = vector.extract_strided_slice %30 {offsets = [0, 64], sizes = [2, 32], strides = [1, 1]} : vector<2x96xf32> to vector<2x32xf32>
    %52 = vector.extract_strided_slice %34 {offsets = [0, 64], sizes = [2, 32], strides = [1, 1]} : vector<2x96xf32> to vector<2x32xf32>
    %53 = arith.mulf %42, %52 : vector<2x32xf32>
    %54 = arith.addf %51, %53 : vector<2x32xf32>
    %55 = math.tanh %54 : vector<2x32xf32>
    %cst_30 = arith.constant 1.000000e+00 : f32
    %56 = vector.broadcast %cst_30 : f32 to vector<2x32xf32>
    %57 = arith.subf %56, %50 : vector<2x32xf32>
    %58 = arith.mulf %57, %55 : vector<2x32xf32>
    %59 = arith.mulf %50, %31 : vector<2x32xf32>
    %60 = arith.addf %58, %59 : vector<2x32xf32>
    %61 = arith.mulf %60, %60 : vector<2x32xf32>
    %cst_31 = arith.constant dense<0.000000e+00> : vector<2xf32>
    %62 = vector.multi_reduction <add>, %61, %cst_31 [1] : vector<2x32xf32> to vector<2xf32>
    %63 = vector.shape_cast %62 : vector<2xf32> to vector<2x1xf32>
    %64 = math.sqrt %63 : vector<2x1xf32>
    %cst_32 = arith.constant 1.000000e-10 : f32
    %65 = vector.broadcast %cst_32 : f32 to vector<2x1xf32>
    %66 = arith.addf %64, %65 : vector<2x1xf32>
    %67 = tpu.reciprocal %66 : vector<2x1xf32> -> vector<2x1xf32>
    %68 = vector.broadcast %67 : vector<2x1xf32> to vector<2x32xf32>
    %69 = arith.mulf %60, %68 : vector<2x32xf32>
    %cst_33 = arith.constant dense<0.000000e+00> : vector<2x96xf32>
    %70 = tpu.matmul %60, %3, %cst_33 {dimension_numbers = #tpu.dot_dimension_numbers<[1], [0], [0], [1], [0, 0, 1, 1], [], []>} : vector<2x32xf32>, vector<32x96xf32>, vector<2x96xf32> -> vector<2x96xf32>
    %71 = vector.broadcast %8 : vector<1x96xf32> to vector<2x96xf32>
    %72 = arith.addf %70, %71 : vector<2x96xf32>
    %73 = vector.extract_strided_slice %30 {offsets = [0, 0], sizes = [2, 32], strides = [1, 1]} : vector<2x96xf32> to vector<2x32xf32>
    %74 = vector.extract_strided_slice %72 {offsets = [0, 0], sizes = [2, 32], strides = [1, 1]} : vector<2x96xf32> to vector<2x32xf32>
    %75 = arith.addf %73, %74 : vector<2x32xf32>
    %76 = arith.negf %75 : vector<2x32xf32>
    %77 = math.exp %76 : vector<2x32xf32>
    %cst_34 = arith.constant 1.000000e+00 : f32
    %78 = vector.broadcast %cst_34 : f32 to vector<2x32xf32>
    %79 = arith.addf %78, %77 : vector<2x32xf32>
    %80 = arith.divf %78, %79 : vector<2x32xf32>
    %81 = vector.extract_strided_slice %30 {offsets = [0, 32], sizes = [2, 32], strides = [1, 1]} : vector<2x96xf32> to vector<2x32xf32>
    %82 = vector.extract_strided_slice %72 {offsets = [0, 32], sizes = [2, 32], strides = [1, 1]} : vector<2x96xf32> to vector<2x32xf32>
    %83 = arith.addf %81, %82 : vector<2x32xf32>
    %84 = arith.negf %83 : vector<2x32xf32>
    %85 = math.exp %84 : vector<2x32xf32>
    %cst_35 = arith.constant 1.000000e+00 : f32
    %86 = vector.broadcast %cst_35 : f32 to vector<2x32xf32>
    %87 = arith.addf %86, %85 : vector<2x32xf32>
    %88 = arith.divf %86, %87 : vector<2x32xf32>
    %89 = vector.extract_strided_slice %30 {offsets = [0, 64], sizes = [2, 32], strides = [1, 1]} : vector<2x96xf32> to vector<2x32xf32>
    %90 = vector.extract_strided_slice %72 {offsets = [0, 64], sizes = [2, 32], strides = [1, 1]} : vector<2x96xf32> to vector<2x32xf32>
    %91 = arith.mulf %80, %90 : vector<2x32xf32>
    %92 = arith.addf %89, %91 : vector<2x32xf32>
    %93 = math.tanh %92 : vector<2x32xf32>
    %cst_36 = arith.constant 1.000000e+00 : f32
    %94 = vector.broadcast %cst_36 : f32 to vector<2x32xf32>
    %95 = arith.subf %94, %88 : vector<2x32xf32>
    %96 = arith.mulf %95, %93 : vector<2x32xf32>
    %97 = arith.mulf %88, %60 : vector<2x32xf32>
    %98 = arith.addf %96, %97 : vector<2x32xf32>
    %99 = arith.mulf %98, %98 : vector<2x32xf32>
    %cst_37 = arith.constant dense<0.000000e+00> : vector<2xf32>
    %100 = vector.multi_reduction <add>, %99, %cst_37 [1] : vector<2x32xf32> to vector<2xf32>
    %101 = vector.shape_cast %100 : vector<2xf32> to vector<2x1xf32>
    %102 = math.sqrt %101 : vector<2x1xf32>
    %cst_38 = arith.constant 1.000000e-10 : f32
    %103 = vector.broadcast %cst_38 : f32 to vector<2x1xf32>
    %104 = arith.addf %102, %103 : vector<2x1xf32>
    %105 = tpu.reciprocal %104 : vector<2x1xf32> -> vector<2x1xf32>
    %106 = vector.broadcast %105 : vector<2x1xf32> to vector<2x32xf32>
    %107 = arith.mulf %98, %106 : vector<2x32xf32>
    %108 = arith.mulf %69, %107 : vector<2x32xf32>
    %cst_39 = arith.constant dense<0.000000e+00> : vector<2xf32>
    %109 = vector.multi_reduction <add>, %108, %cst_39 [1] : vector<2x32xf32> to vector<2xf32>
    %110 = vector.shape_cast %109 : vector<2xf32> to vector<2x1xf32>
    %111 = vector.shape_cast %110 : vector<2x1xf32> to vector<1x2x1xf32>
    %cst_40 = arith.constant dense<0.000000e+00> : vector<1xf32>
    %112 = vector.multi_reduction <add>, %111, %cst_40 [1, 2] : vector<1x2x1xf32> to vector<1xf32>
    %113 = vector.shape_cast %112 : vector<1xf32> to vector<1x1x1xf32>
    %114 = vector.extract %113[0, 0, 0] : f32 from vector<1x1x1xf32>
    %cst_41 = arith.constant 2.000000e+00 : f32
    %115 = arith.divf %114, %cst_41 : f32
    %116 = arith.mulf %115, %115 : f32
    %cst_42 = arith.constant 0.000000e+00 : f32
    %117 = arith.addf %cst_42, %116 : f32
    %c0_43 = arith.constant 0 : index
    %118 = memref.load %arg13[%c0_43] : memref<1xf32, #tpu.memory_space<smem>>
    memref.store %117, %arg13[%c0_43] : memref<1xf32, #tpu.memory_space<smem>>
    %cst_44 = arith.constant 0.000000e+00 : f32
    %119 = vector.broadcast %cst_44 : f32 to vector<8x32xf32>
    %c464 = arith.constant 464 : index
    %c0_45 = arith.constant 0 : index
    %120 = vector.load %arg6[%c464, %c0_45] : memref<480x128xf32, #tpu.memory_space<vmem>>, vector<8x2xf32>
    %cst_46 = arith.constant dense<0.000000e+00> : vector<8x32xf32>
    %121 = tpu.matmul %120, %60, %cst_46 {dimension_numbers = #tpu.dot_dimension_numbers<[1], [0], [0], [1], [0, 0, 1, 1], [], []>} : vector<8x2xf32>, vector<2x32xf32>, vector<8x32xf32> -> vector<8x32xf32>
    %122 = arith.addf %119, %121 : vector<8x32xf32>
    %c472 = arith.constant 472 : index
    %c0_47 = arith.constant 0 : index
    %123 = vector.load %arg6[%c472, %c0_47] : memref<480x128xf32, #tpu.memory_space<vmem>>, vector<8x2xf32>
    %cst_48 = arith.constant dense<0.000000e+00> : vector<8x32xf32>
    %124 = tpu.matmul %123, %98, %cst_48 {dimension_numbers = #tpu.dot_dimension_numbers<[1], [0], [0], [1], [0, 0, 1, 1], [], []>} : vector<8x2xf32>, vector<2x32xf32>, vector<8x32xf32> -> vector<8x32xf32>
    %125 = arith.addf %122, %124 : vector<8x32xf32>
    %cst_49 = arith.constant dense<0.000000e+00> : vector<8x1xf32>
    %126 = tpu.matmul %125, %4, %cst_49 {dimension_numbers = #tpu.dot_dimension_numbers<[1], [0], [0], [1], [0, 0, 1, 1], [], []>} : vector<8x32xf32>, vector<32x1xf32>, vector<8x1xf32> -> vector<8x1xf32>
    %c0_50 = arith.constant 0 : index
    %c0_51 = arith.constant 0 : index
    %127 = vector.load %arg5[%c0_50, %c0_51] : memref<8x256xf32, #tpu.memory_space<vmem>>, vector<8x256xf32>
    %cst_52 = arith.constant 1.000000e-10 : f32
    %128 = vector.broadcast %cst_52 : f32 to vector<8x256xf32>
    %129 = arith.addf %127, %128 : vector<8x256xf32>
    %c0_53 = arith.constant 0 : index
    %c0_54 = arith.constant 0 : index
    %130 = vector.load %arg11[%c0_53, %c0_54] : memref<8x256xf32, #tpu.memory_space<vmem>>, vector<8x256xf32>
    tpu.vector_store %arg11[%c0_53, %c0_54], %129 {strides = array<i32>} : memref<8x256xf32, #tpu.memory_space<vmem>>, vector<8x256xf32>,
    %c0_55 = arith.constant 0 : index
    %c0_56 = arith.constant 0 : index
    %131 = vector.load %arg4[%c0_55, %c0_56] : memref<8x256xf32, #tpu.memory_space<vmem>>, vector<8x256xf32>
    %132 = tpu.reciprocal %129 : vector<8x256xf32> -> vector<8x256xf32>
    %133 = arith.mulf %131, %132 : vector<8x256xf32>
    %cst_57 = arith.constant 0.000000e+00 : f32
    %cst_58 = arith.constant 5.000000e+00 : f32
    %134 = vector.broadcast %cst_57 : f32 to vector<8x256xf32>
    %135 = arith.maximumf %134, %133 : vector<8x256xf32>
    %136 = vector.broadcast %cst_58 : f32 to vector<8x256xf32>
    %137 = arith.minimumf %136, %135 : vector<8x256xf32>
    %c0_59 = arith.constant 0 : index
    %c0_60 = arith.constant 0 : index
    %138 = vector.load %arg7[%c0_59, %c0_60] : memref<8x256xf32, #tpu.memory_space<vmem>>, vector<8x256xf32>
    tpu.vector_store %arg7[%c0_59, %c0_60], %137 {strides = array<i32>} : memref<8x256xf32, #tpu.memory_space<vmem>>, vector<8x256xf32>,
    %139 = math.log1p %129 : vector<8x256xf32>
    %cst_61 = arith.constant 1.000000e-03 : f32
    %cst_62 = arith.constant 1.000000e+01 : f32
    %140 = vector.broadcast %cst_61 : f32 to vector<8x256xf32>
    %141 = arith.maximumf %140, %139 : vector<8x256xf32>
    %142 = vector.broadcast %cst_62 : f32 to vector<8x256xf32>
    %143 = arith.minimumf %142, %141 : vector<8x256xf32>
    %c0_63 = arith.constant 0 : index
    %c0_64 = arith.constant 0 : index
    %144 = vector.load %arg8[%c0_63, %c0_64] : memref<8x256xf32, #tpu.memory_space<vmem>>, vector<8x256xf32>
    tpu.vector_store %arg8[%c0_63, %c0_64], %143 {strides = array<i32>} : memref<8x256xf32, #tpu.memory_space<vmem>>, vector<8x256xf32>,
    %145 = math.log %129 : vector<8x256xf32>
    %146 = vector.broadcast %9 : vector<1x1xf32> to vector<8x256xf32>
    %147 = arith.mulf %146, %145 : vector<8x256xf32>
    %148 = vector.broadcast %126 : vector<8x1xf32> to vector<8x256xf32>
    %149 = arith.addf %147, %148 : vector<8x256xf32>
    %150 = vector.broadcast %10 : vector<1x1xf32> to vector<8x256xf32>
    %151 = arith.addf %149, %150 : vector<8x256xf32>
    %152 = arith.negf %151 : vector<8x256xf32>
    %153 = math.exp %152 : vector<8x256xf32>
    %cst_65 = arith.constant 1.000000e+00 : f32
    %154 = vector.broadcast %cst_65 : f32 to vector<8x256xf32>
    %155 = arith.addf %154, %153 : vector<8x256xf32>
    %156 = arith.divf %154, %155 : vector<8x256xf32>
    %c0_66 = arith.constant 0 : index
    %c0_67 = arith.constant 0 : index
    %157 = vector.load %arg9[%c0_66, %c0_67] : memref<8x256xf32, #tpu.memory_space<vmem>>, vector<8x256xf32>
    tpu.vector_store %arg9[%c0_66, %c0_67], %156 {strides = array<i32>} : memref<8x256xf32, #tpu.memory_space<vmem>>, vector<8x256xf32>,
    %158 = arith.mulf %129, %156 : vector<8x256xf32>
    %c0_68 = arith.constant 0 : index
    %c0_69 = arith.constant 0 : index
    %159 = vector.load %arg10[%c0_68, %c0_69] : memref<8x256xf32, #tpu.memory_space<vmem>>, vector<8x256xf32>
    tpu.vector_store %arg10[%c0_68, %c0_69], %158 {strides = array<i32>} : memref<8x256xf32, #tpu.memory_space<vmem>>, vector<8x256xf32>,
    %cst_70 = arith.constant 1.000000e-10 : f32
    %160 = vector.broadcast %cst_70 : f32 to vector<8x256xf32>
    %161 = arith.addf %158, %160 : vector<8x256xf32>
    %162 = math.log %161 : vector<8x256xf32>
    %cst_71 = arith.constant dense<0.000000e+00> : vector<8x128xf32>
    %163 = tpu.matmul %162, %11, %cst_71 {dimension_numbers = #tpu.dot_dimension_numbers<[1], [0], [0], [1], [0, 0, 1, 1], [], []>} : vector<8x256xf32>, vector<256x128xf32>, vector<8x128xf32> -> vector<8x128xf32>
    %164 = vector.broadcast %12 : vector<1x128xf32> to vector<8x128xf32>
    %165 = arith.addf %163, %164 : vector<8x128xf32>
    %c0_72 = arith.constant 0 : index
    %c0_73 = arith.constant 0 : index
    %166 = vector.load %arg12[%c0_72, %c0_73] : memref<8x128xf32, #tpu.memory_space<vmem>>, vector<8x128xf32>
    tpu.vector_store %arg12[%c0_72, %c0_73], %165 {strides = array<i32>} : memref<8x128xf32, #tpu.memory_space<vmem>>, vector<8x128xf32>,
    return
  }
}

</mosaic_0001>

<llo_original>
// kernel: squeeze.9
$region0: #{squeeze.9}
  %s0 = inlined_call_operand.vmem [shape: s32[4], index: 0, kind: input, shape index: {}]
  %s1 = inlined_call_operand.hbm [shape: s32[2,2], index: 1, kind: output, shape index: {}]
  $region1: #{squeeze.9} parent=0
    #allocation0 [shape = 'u8[1024]{0}', space=vmem, size = 0x400, scoped, tag = 'operand span for operand 1']
    #allocation1 [shape = 's32[1]{0}', space=sflag, size = 0x4, scoped, tag = 'scoped memory for squeeze.9']
    #allocation2 [shape = 'u8[4096]{0}', space=vmem, size = 0x1000, scoped, tag = 'scoped mem for output reshape']
    #allocation3 [shape = 'u8[4096]{0}', space=vmem, size = 0x1000, scoped, tag = 'scoped mem for input reshape']
    %2 = vsyncpa [#allocation1], 0
    %s4 = sshll.u32 1, 1
    %s5 = ssub.s32 %s4, 1
    %v6 = vld [vmem:[%s0] sm:%s5]
    %7 = vst [vmem:[#allocation3] sm:%s5] %v6
    %v8 = vld [vmem:[#allocation3] sm:$0x1]
    %vm9 = vcmask 15360
    %10 = vst.msk [vmem:[#allocation2] sm:$0x1] %vm9, %v8
    %v11 = vld [vmem:[#allocation3] sm:$0x1]
    %12 = vrot.lane.b32.xlu0 %v11, 126
    %v13 = vpop.permute.xlu0 %12
    %vm14 = vcmask 15360
    %s15 = scalar_lea.vmem [#allocation2], 1
    %16 = vst.msk [vmem:[%s15] sm:$0x1] %vm14, %v13
    %s18 = sshll.u32 1, 2
    %s19 = ssub.s32 %s18, 1
    %v21 = vld [vmem:[#allocation2] sm:%s19]
    %s22 = sshll.u32 1, 2
    %s23 = ssub.s32 %s22, 1
    %24 = vst [vmem:[#allocation0] sm:%s23] %v21
    %s26 = ssub.s32 32, 32
    %27 = vsyncadd [#allocation1], %s26
    %s29 = sshll.u32 [#allocation0], 4
    %s30 = int_to_ptr.vmem [resolvable:$true] %s29
    %32 = dma.vmem_to_hbm [thread:$0]  %s30, 32, %s1, [#allocation1]
    %33 = dma.done [#allocation1], 32
    %34 = vsyncpa [#allocation1], 1

// kernel: forward.1
$region0: #{forward.1}
  #allocation0 [shape = 'u32[]', space=smem, size = 0x4, offset = 0x4, fixed_abs, tag = 'smem constant byte address 0x4 - core index']
  #allocation1 [shape = 'u32[144,128]{1,0:T(1,128)}', space=vmem, size = 0x12000, scoped, tag = 'internal scratch']
  %s0 = inlined_call_operand.vmem [shape: f32[6,64], index: 0, kind: input, shape index: {}]
  %s1 = inlined_call_operand.vmem [shape: f32[6,6], index: 1, kind: input, shape index: {}]
  %s2 = inlined_call_operand.vmem [shape: f32[2,6], index: 2, kind: input, shape index: {}]
  %s3 = inlined_call_operand.vmem [shape: f32[2,32], index: 3, kind: input, shape index: {}]
  %s4 = inlined_call_operand.vmem [shape: f32[8,256], index: 4, kind: input, shape index: {}]
  %s5 = inlined_call_operand.vmem [shape: f32[8,256], index: 5, kind: input, shape index: {}]
  %s6 = inlined_call_operand.vmem [shape: f32[480,128], index: 6, kind: input, shape index: {}]
  %s7 = inlined_call_operand.vmem [shape: f32[8,256], index: 7, kind: output, shape index: {0}]
  %s8 = inlined_call_operand.vmem [shape: f32[8,256], index: 8, kind: output, shape index: {1}]
  %s9 = inlined_call_operand.vmem [shape: f32[8,256], index: 9, kind: output, shape index: {2}]
  %s10 = inlined_call_operand.vmem [shape: f32[8,256], index: 10, kind: output, shape index: {3}]
  %s11 = inlined_call_operand.vmem [shape: f32[8,256], index: 11, kind: output, shape index: {4}]
  %s12 = inlined_call_operand.vmem [shape: f32[8,128], index: 12, kind: output, shape index: {5}]
  %s13 = inlined_call_operand.hbm [shape: f32[1], index: 13, kind: output, shape index: {6}]
  %14 = xla_tuple %s7, %s8, %s9, %s10, %s11, %s12, %s13
  %s15 = sld [smem:[#allocation0]]
  $region86: #{forward.1} parent=0
    _
  %s17 = ssub.s32 1, %s15
  %s18 = scalar_select 0, %s17, %s15
  $region1: #{forward.1} parent=0
    #allocation2 [shape = 'u8[512]{0}', space=smem, size = 0x200, scoped, tag = 'output window, operand 6, single buffered']
    #allocation3 [shape = 's32[1]{0}', space=sflag, size = 0x4, scoped, tag = 'scoped memory for forward.1']
    %19 = vsyncpa [#allocation3], 0
    // Predicated region
    $region2: #{forward.1} parent=1 // pred_check
      _
    $region3: #{forward.1} parent=1 // pred_check_branch
      %21 = sbr.rel (0) target = $region5
    $region4: #{forward.1} parent=1 // pred_region
      _
    $region5: #{forward.1} parent=1 // pred_fallthru
      _
    // Predicated region
    $region6: #{forward.1} parent=1 // pred_check
      _
    $region7: #{forward.1} parent=1 // pred_check_branch
      %23 = sbr.rel (0) target = $region9
    $region8: #{forward.1} parent=1 // pred_region
      _
    $region9: #{forward.1} parent=1 // pred_fallthru
      _
    // Predicated region
    $region10: #{forward.1} parent=1 // pred_check
      _
    $region11: #{forward.1} parent=1 // pred_check_branch
      %25 = sbr.rel (0) target = $region13
    $region12: #{forward.1} parent=1 // pred_region
      _
    $region13: #{forward.1} parent=1 // pred_fallthru
      _
    // Predicated region
    $region14: #{forward.1} parent=1 // pred_check
      _
    $region15: #{forward.1} parent=1 // pred_check_branch
      %27 = sbr.rel (0) target = $region17
    $region16: #{forward.1} parent=1 // pred_region
      _
    $region17: #{forward.1} parent=1 // pred_fallthru
      _
    // Predicated region
    $region18: #{forward.1} parent=1 // pred_check
      _
    $region19: #{forward.1} parent=1 // pred_check_branch
      %29 = sbr.rel (0) target = $region21
    $region20: #{forward.1} parent=1 // pred_region
      _
    $region21: #{forward.1} parent=1 // pred_fallthru
      _
    // Predicated region
    $region22: #{forward.1} parent=1 // pred_check
      _
    $region23: #{forward.1} parent=1 // pred_check_branch
      %31 = sbr.rel (0) target = $region25
    $region24: #{forward.1} parent=1 // pred_region
      _
    $region25: #{forward.1} parent=1 // pred_fallthru
      _
    // Predicated region
    $region26: #{forward.1} parent=1 // pred_check
      _
    $region27: #{forward.1} parent=1 // pred_check_branch
      %33 = sbr.rel (0) target = $region29
    $region28: #{forward.1} parent=1 // pred_region
      _
    $region29: #{forward.1} parent=1 // pred_fallthru
      _
    %v34 = vld [vmem:[%s6] sm:$0xff]
    %v35 = vld [vmem:[%s6 + $0x8] sm:$0xff]
    %v36 = vld [vmem:[%s6 + $0x10] sm:$0xff]
    %v37 = vld [vmem:[%s6 + $0x18] sm:$0xff]
    %v38 = vld [vmem:[%s6 + $0x20] sm:$0xff]
    %v39 = vld [vmem:[%s6 + $0x28] sm:$0xff]
    %v40 = vld [vmem:[%s6 + $0x30] sm:$0xff]
    %v41 = vld [vmem:[%s6 + $0x38] sm:$0xff]
    %v42 = vld [vmem:[%s6 + $0x40] sm:$0xff]
    %v43 = vld [vmem:[%s6 + $0x48] sm:$0xff]
    %v44 = vld [vmem:[%s6 + $0x50] sm:$0xff]
    %v45 = vld [vmem:[%s6 + $0x58] sm:$0xff]
    %v46 = vld [vmem:[%s6 + $0x60] sm:$0xff]
    %v47 = vld [vmem:[%s6 + $0x68] sm:$0xff]
    %v48 = vld [vmem:[%s6 + $0x70] sm:$0xff]
    %v49 = vld [vmem:[%s6 + $0x78] sm:$0xff]
    %v50 = vld [vmem:[%s6 + $0x80] sm:$0xff]
    %v51 = vld [vmem:[%s6 + $0x88] sm:$0xff]
    %v52 = vld [vmem:[%s6 + $0x90] sm:$0xff]
    %v53 = vld [vmem:[%s6 + $0x98] sm:$0xff]
    %v54 = vld [vmem:[%s6 + $0xa0] sm:$0xff]
    %v55 = vld [vmem:[%s6 + $0xa8] sm:$0xff]
    %v56 = vld [vmem:[%s6 + $0xb0] sm:$0xff]
    %v57 = vld [vmem:[%s6 + $0xb8] sm:$0xff]
    %v58 = vld [vmem:[%s6 + $0xc0] sm:$0x1]
    %v59 = vld [vmem:[%s6 + $0xc1] sm:$0x1]
    %v60 = vld [vmem:[%s6 + $0xc2] sm:$0x1]
    %v61 = vld [vmem:[%s6 + $0xc3] sm:$0x1]
    %v62 = vld [vmem:[%s6 + $0xc4] sm:$0x1]
    %v63 = vld [vmem:[%s6 + $0xc8] sm:$0xff]
    %v64 = vld [vmem:[%s6 + $0xd0] sm:$0xff]
    %v65 = vld [vmem:[%s6 + $0xd8] sm:$0xff]
    %v66 = vld [vmem:[%s6 + $0xe0] sm:$0xff]
    %v67 = vld [vmem:[%s6 + $0xe8] sm:$0xff]
    %v68 = vld [vmem:[%s6 + $0xf0] sm:$0xff]
    %v69 = vld [vmem:[%s6 + $0xf8] sm:$0xff]
    %v70 = vld [vmem:[%s6 + $0x100] sm:$0xff]
    %v71 = vld [vmem:[%s6 + $0x108] sm:$0xff]
    %v72 = vld [vmem:[%s6 + $0x110] sm:$0xff]
    %v73 = vld [vmem:[%s6 + $0x118] sm:$0xff]
    %v74 = vld [vmem:[%s6 + $0x120] sm:$0xff]
    %v75 = vld [vmem:[%s6 + $0x128] sm:$0xff]
    %v76 = vld [vmem:[%s6 + $0x130] sm:$0xff]
    %v77 = vld [vmem:[%s6 + $0x138] sm:$0xff]
    %v78 = vld [vmem:[%s6 + $0x140] sm:$0xff]
    %v79 = vld [vmem:[%s6 + $0x148] sm:$0xff]
    %v80 = vld [vmem:[%s6 + $0x150] sm:$0xff]
    %v81 = vld [vmem:[%s6 + $0x158] sm:$0xff]
    %v82 = vld [vmem:[%s6 + $0x160] sm:$0xff]
    %v83 = vld [vmem:[%s6 + $0x168] sm:$0xff]
    %v84 = vld [vmem:[%s6 + $0x170] sm:$0xff]
    %v85 = vld [vmem:[%s6 + $0x178] sm:$0xff]
    %v86 = vld [vmem:[%s6 + $0x180] sm:$0xff]
    %v87 = vld [vmem:[%s6 + $0x188] sm:$0xff]
    %v88 = vld [vmem:[%s6 + $0x190] sm:$0xff]
    %v89 = vld [vmem:[%s6 + $0x198] sm:$0xff]
    %v90 = vld [vmem:[%s6 + $0x1a0] sm:$0xff]
    %v91 = vld [vmem:[%s6 + $0x1a8] sm:$0xff]
    %v92 = vld [vmem:[%s6 + $0x1b0] sm:$0xff]
    %v93 = vld [vmem:[%s6 + $0x1b8] sm:$0xff]
    %v94 = vld [vmem:[%s6 + $0x1c0] sm:$0xff]
    %v95 = vld [vmem:[%s6 + $0x1c8] sm:$0x1]
    %v96 = vld [vmem:[%s0] sm:$0x3f]
    %v97 = vlaneseq
    %v98 = vshrl.u32 %v97, 7
    %v99 = vsub.s32 0, %v98
    %v100 = vrot.slane %v58, %v99
    %vm101 = vcmask 523264
    %v103 = vsel %vm101, %v96, 0
    %105 = vmatprep.subr.mxu0 0.0
    %106 = vmatpush1.msra.mxu0 0.0
    %107 = vmatprep.subr.mxu0 0.0
    %108 = vmatpush1.msra.mxu0 0.0
    %109 = vmatprep.subr.mxu0 0.0
    %110 = vmatpush1.msra.mxu0 0.0
    %111 = vmatprep.subr.mxu0 0.0
    %112 = vmatpush1.msra.mxu0 0.0
    %113 = vmatprep.subr.mxu0 0.0
    %114 = vmatpush1.msra.mxu0 0.0
    %115 = vmatprep.subr.mxu0 0.0
    %116 = vmatpush1.msra.mxu0 0.0
    %117 = vmatprep.subr.mxu0 0.0
    %118 = vmatpush1.msra.mxu0 0.0
    %119 = vmatprep.subr.mxu0 0.0
    %120 = vmatpush1.msra.mxu0 0.0
    %121 = vmatprep.subr.mxu0 0.0
    %122 = vmatpush1.msra.mxu0 %v41
    %123 = vmatprep.subr.mxu0 0.0
    %124 = vmatpush1.msra.mxu0 %v40
    %125 = vmatprep.subr.mxu0 0.0
    %126 = vmatpush1.msra.mxu0 %v39
    %127 = vmatprep.subr.mxu0 0.0
    %128 = vmatpush1.msra.mxu0 %v38
    %129 = vmatprep.subr.mxu0 0.0
    %130 = vmatpush1.msra.mxu0 %v37
    %131 = vmatprep.subr.mxu0 0.0
    %132 = vmatpush1.msra.mxu0 %v36
    %133 = vmatprep.subr.mxu0 0.0
    %134 = vmatpush1.msra.mxu0 %v35
    %135 = vmatprep.subr.mxu0 0.0
    %136 = vmatpush1.msra.mxu0 %v34
    %137 = vmatprep.subr.mxu0 0.0
    %138 = vmatpush2.msra.mxu0 0.0
    %139 = vmatprep.subr.mxu0 0.0
    %140 = vmatpush2.msra.mxu0 0.0
    %141 = vmatprep.subr.mxu0 0.0
    %142 = vmatpush2.msra.mxu0 0.0
    %143 = vmatprep.subr.mxu0 0.0
    %144 = vmatpush2.msra.mxu0 0.0
    %145 = vmatprep.subr.mxu0 0.0
    %146 = vmatpush2.msra.mxu0 0.0
    %147 = vmatprep.subr.mxu0 0.0
    %148 = vmatpush2.msra.mxu0 0.0
    %149 = vmatprep.subr.mxu0 0.0
    %150 = vmatpush2.msra.mxu0 0.0
    %151 = vmatprep.subr.mxu0 0.0
    %152 = vmatpush2.msra.mxu0 0.0
    %153 = vmatprep.subr.mxu0 0.0
    %154 = vmatpush2.msra.mxu0 0.0
    %155 = vmatprep.subr.mxu0 0.0
    %156 = vmatpush2.msra.mxu0 0.0
    %157 = vmatprep.subr.mxu0 0.0
    %158 = vmatpush2.msra.mxu0 0.0
    %159 = vmatprep.subr.mxu0 0.0
    %160 = vmatpush2.msra.mxu0 0.0
    %161 = vmatprep.subr.mxu0 0.0
    %162 = vmatpush2.msra.mxu0 0.0
    %163 = vmatprep.subr.mxu0 0.0
    %164 = vmatpush2.msra.mxu0 0.0
    %165 = vmatprep.subr.mxu0 0.0
    %166 = vmatpush2.msra.mxu0 0.0
    %167 = vmatprep.subr.mxu0 0.0
    %168 = vmatpush2.msra.mxu0 0.0
    %169 = vmatprep.mubr.f32.mxu0 0.0
    %170 = vmatmul.mubr.f32.gmra.mxu0 %v103
    %v171 = vpop.f32.mrf.mxu0
    %v172 = vadd.f32 %v100, %v171
    %v173 = vpop.f32.mrf.mxu0
    %174 = vdwg.mxu0
    %v175 = vmax.f32 %v172, 0.0
    %vm176 = vcmask 261120
    %v178 = vsel %vm176, %v175, 0
    %180 = vmatprep.subr.mxu0 0.0
    %181 = vmatpush1.msra.mxu0 0.0
    %182 = vmatprep.subr.mxu0 0.0
    %183 = vmatpush1.msra.mxu0 0.0
    %184 = vmatprep.subr.mxu0 0.0
    %185 = vmatpush1.msra.mxu0 0.0
    %186 = vmatprep.subr.mxu0 0.0
    %187 = vmatpush1.msra.mxu0 0.0
    %188 = vmatprep.subr.mxu0 0.0
    %189 = vmatpush1.msra.mxu0 0.0
    %190 = vmatprep.subr.mxu0 0.0
    %191 = vmatpush1.msra.mxu0 0.0
    %192 = vmatprep.subr.mxu0 0.0
    %193 = vmatpush1.msra.mxu0 0.0
    %194 = vmatprep.subr.mxu0 0.0
    %195 = vmatpush1.msra.mxu0 0.0
    %196 = vmatprep.subr.mxu0 0.0
    %197 = vmatpush1.msra.mxu0 0.0
    %198 = vmatprep.subr.mxu0 0.0
    %199 = vmatpush1.msra.mxu0 0.0
    %200 = vmatprep.subr.mxu0 0.0
    %201 = vmatpush1.msra.mxu0 0.0
    %202 = vmatprep.subr.mxu0 0.0
    %203 = vmatpush1.msra.mxu0 0.0
    %204 = vmatprep.subr.mxu0 0.0
    %205 = vmatpush1.msra.mxu0 %v45
    %206 = vmatprep.subr.mxu0 0.0
    %207 = vmatpush1.msra.mxu0 %v44
    %208 = vmatprep.subr.mxu0 0.0
    %209 = vmatpush1.msra.mxu0 %v43
    %210 = vmatprep.subr.mxu0 0.0
    %211 = vmatpush1.msra.mxu0 %v42
    %212 = vmatprep.subr.mxu0 0.0
    %213 = vmatpush2.msra.mxu0 0.0
    %214 = vmatprep.subr.mxu0 0.0
    %215 = vmatpush2.msra.mxu0 0.0
    %216 = vmatprep.subr.mxu0 0.0
    %217 = vmatpush2.msra.mxu0 0.0
    %218 = vmatprep.subr.mxu0 0.0
    %219 = vmatpush2.msra.mxu0 0.0
    %220 = vmatprep.subr.mxu0 0.0
    %221 = vmatpush2.msra.mxu0 0.0
    %222 = vmatprep.subr.mxu0 0.0
    %223 = vmatpush2.msra.mxu0 0.0
    %224 = vmatprep.subr.mxu0 0.0
    %225 = vmatpush2.msra.mxu0 0.0
    %226 = vmatprep.subr.mxu0 0.0
    %227 = vmatpush2.msra.mxu0 0.0
    %228 = vmatprep.subr.mxu0 0.0
    %229 = vmatpush2.msra.mxu0 0.0
    %230 = vmatprep.subr.mxu0 0.0
    %231 = vmatpush2.msra.mxu0 0.0
    %232 = vmatprep.subr.mxu0 0.0
    %233 = vmatpush2.msra.mxu0 0.0
    %234 = vmatprep.subr.mxu0 0.0
    %235 = vmatpush2.msra.mxu0 0.0
    %236 = vmatprep.subr.mxu0 0.0
    %237 = vmatpush2.msra.mxu0 0.0
    %238 = vmatprep.subr.mxu0 0.0
    %239 = vmatpush2.msra.mxu0 0.0
    %240 = vmatprep.subr.mxu0 0.0
    %241 = vmatpush2.msra.mxu0 0.0
    %242 = vmatprep.subr.mxu0 0.0
    %243 = vmatpush2.msra.mxu0 0.0
    %244 = vmatprep.mubr.f32.mxu0 0.0
    %245 = vmatmul.mubr.f32.gmra.mxu0 %v178
    %v246 = vpop.f32.mrf.mxu0
    %v247 = vadd.f32 0.0, %v246
    %v248 = vpop.f32.mrf.mxu0
    %249 = vdwg.mxu0
    %v250 = vld [vmem:[%s1] sm:$0x3f]
    %v251 = vlaneseq
    %v252 = vshrl.u32 %v251, 7
    %v253 = vsub.s32 0, %v252
    %v254 = vrot.slane %v59, %v253
    %vm255 = vcmask 48128
    %v257 = vsel %vm255, %v250, 0
    %vm259 = vcmask 1045504
    %v261 = vsel %vm259, %v247, 0
    %263 = vmatprep.subr.mxu0 0.0
    %264 = vmatpush1.msra.mxu0 0.0
    %265 = vmatprep.subr.mxu0 0.0
    %266 = vmatpush1.msra.mxu0 0.0
    %267 = vmatprep.subr.mxu0 0.0
    %268 = vmatpush1.msra.mxu0 0.0
    %269 = vmatprep.subr.mxu0 0.0
    %270 = vmatpush1.msra.mxu0 0.0
    %271 = vmatprep.subr.mxu0 0.0
    %272 = vmatpush1.msra.mxu0 0.0
    %273 = vmatprep.subr.mxu0 0.0
    %274 = vmatpush1.msra.mxu0 0.0
    %275 = vmatprep.subr.mxu0 0.0
    %276 = vmatpush1.msra.mxu0 0.0
    %277 = vmatprep.subr.mxu0 0.0
    %278 = vmatpush1.msra.mxu0 0.0
    %279 = vmatprep.subr.mxu0 0.0
    %280 = vmatpush1.msra.mxu0 0.0
    %281 = vmatprep.subr.mxu0 0.0
    %282 = vmatpush1.msra.mxu0 0.0
    %283 = vmatprep.subr.mxu0 0.0
    %284 = vmatpush1.msra.mxu0 0.0
    %285 = vmatprep.subr.mxu0 0.0
    %286 = vmatpush1.msra.mxu0 0.0
    %287 = vmatprep.subr.mxu0 0.0
    %288 = vmatpush1.msra.mxu0 0.0
    %289 = vmatprep.subr.mxu0 0.0
    %290 = vmatpush1.msra.mxu0 0.0
    %291 = vmatprep.subr.mxu0 0.0
    %292 = vmatpush1.msra.mxu0 0.0
    %293 = vmatprep.subr.mxu0 0.0
    %294 = vmatpush1.msra.mxu0 %v261
    %295 = vmatprep.subr.mxu0 0.0
    %296 = vmatpush2.msra.mxu0 0.0
    %297 = vmatprep.subr.mxu0 0.0
    %298 = vmatpush2.msra.mxu0 0.0
    %299 = vmatprep.subr.mxu0 0.0
    %300 = vmatpush2.msra.mxu0 0.0
    %301 = vmatprep.subr.mxu0 0.0
    %302 = vmatpush2.msra.mxu0 0.0
    %303 = vmatprep.subr.mxu0 0.0
    %304 = vmatpush2.msra.mxu0 0.0
    %305 = vmatprep.subr.mxu0 0.0
    %306 = vmatpush2.msra.mxu0 0.0
    %307 = vmatprep.subr.mxu0 0.0
    %308 = vmatpush2.msra.mxu0 0.0
    %309 = vmatprep.subr.mxu0 0.0
    %310 = vmatpush2.msra.mxu0 0.0
    %311 = vmatprep.subr.mxu0 0.0
    %312 = vmatpush2.msra.mxu0 0.0
    %313 = vmatprep.subr.mxu0 0.0
    %314 = vmatpush2.msra.mxu0 0.0
    %315 = vmatprep.subr.mxu0 0.0
    %316 = vmatpush2.msra.mxu0 0.0
    %317 = vmatprep.subr.mxu0 0.0
    %318 = vmatpush2.msra.mxu0 0.0
    %319 = vmatprep.subr.mxu0 0.0
    %320 = vmatpush2.msra.mxu0 0.0
    %321 = vmatprep.subr.mxu0 0.0
    %322 = vmatpush2.msra.mxu0 0.0
    %323 = vmatprep.subr.mxu0 0.0
    %324 = vmatpush2.msra.mxu0 0.0
    %325 = vmatprep.subr.mxu0 0.0
    %326 = vmatpush2.msra.mxu0 0.0
    %327 = vmatprep.mubr.f32.mxu0 0.0
    %328 = vmatmul.mubr.f32.gmra.mxu0 %v257
    %v329 = vpop.f32.mrf.mxu0
    %v330 = vadd.f32 %v254, %v329
    %v331 = vpop.f32.mrf.mxu0
    %332 = vdwg.mxu0
    %v333 = vmax.f32 %v330, 0.0
    %v334 = vld [vmem:[%s2] sm:$0x3]
    %v336 = vsel %vm255, %v334, 0
    %v339 = vsel %vm259, %v333, 0
    %341 = vmatprep.subr.mxu0 0.0
    %342 = vmatpush1.msra.mxu0 0.0
    %343 = vmatprep.subr.mxu0 0.0
    %344 = vmatpush1.msra.mxu0 0.0
    %345 = vmatprep.subr.mxu0 0.0
    %346 = vmatpush1.msra.mxu0 0.0
    %347 = vmatprep.subr.mxu0 0.0
    %348 = vmatpush1.msra.mxu0 0.0
    %349 = vmatprep.subr.mxu0 0.0
    %350 = vmatpush1.msra.mxu0 0.0
    %351 = vmatprep.subr.mxu0 0.0
    %352 = vmatpush1.msra.mxu0 0.0
    %353 = vmatprep.subr.mxu0 0.0
    %354 = vmatpush1.msra.mxu0 0.0
    %355 = vmatprep.subr.mxu0 0.0
    %356 = vmatpush1.msra.mxu0 0.0
    %357 = vmatprep.subr.mxu0 0.0
    %358 = vmatpush1.msra.mxu0 0.0
    %359 = vmatprep.subr.mxu0 0.0
    %360 = vmatpush1.msra.mxu0 0.0
    %361 = vmatprep.subr.mxu0 0.0
    %362 = vmatpush1.msra.mxu0 0.0
    %363 = vmatprep.subr.mxu0 0.0
    %364 = vmatpush1.msra.mxu0 0.0
    %365 = vmatprep.subr.mxu0 0.0
    %366 = vmatpush1.msra.mxu0 0.0
    %367 = vmatprep.subr.mxu0 0.0
    %368 = vmatpush1.msra.mxu0 0.0
    %369 = vmatprep.subr.mxu0 0.0
    %370 = vmatpush1.msra.mxu0 0.0
    %371 = vmatprep.subr.mxu0 0.0
    %372 = vmatpush1.msra.mxu0 %v339
    %373 = vmatprep.subr.mxu0 0.0
    %374 = vmatpush2.msra.mxu0 0.0
    %375 = vmatprep.subr.mxu0 0.0
    %376 = vmatpush2.msra.mxu0 0.0
    %377 = vmatprep.subr.mxu0 0.0
    %378 = vmatpush2.msra.mxu0 0.0
    %379 = vmatprep.subr.mxu0 0.0
    %380 = vmatpush2.msra.mxu0 0.0
    %381 = vmatprep.subr.mxu0 0.0
    %382 = vmatpush2.msra.mxu0 0.0
    %383 = vmatprep.subr.mxu0 0.0
    %384 = vmatpush2.msra.mxu0 0.0
    %385 = vmatprep.subr.mxu0 0.0
    %386 = vmatpush2.msra.mxu0 0.0
    %387 = vmatprep.subr.mxu0 0.0
    %388 = vmatpush2.msra.mxu0 0.0
    %389 = vmatprep.subr.mxu0 0.0
    %390 = vmatpush2.msra.mxu0 0.0
    %391 = vmatprep.subr.mxu0 0.0
    %392 = vmatpush2.msra.mxu0 0.0
    %393 = vmatprep.subr.mxu0 0.0
    %394 = vmatpush2.msra.mxu0 0.0
    %395 = vmatprep.subr.mxu0 0.0
    %396 = vmatpush2.msra.mxu0 0.0
    %397 = vmatprep.subr.mxu0 0.0
    %398 = vmatpush2.msra.mxu0 0.0
    %399 = vmatprep.subr.mxu0 0.0
    %400 = vmatpush2.msra.mxu0 0.0
    %401 = vmatprep.subr.mxu0 0.0
    %402 = vmatpush2.msra.mxu0 0.0
    %403 = vmatprep.subr.mxu0 0.0
    %404 = vmatpush2.msra.mxu0 0.0
    %405 = vmatprep.mubr.f32.mxu0 0.0
    %406 = vmatmul.mubr.f32.gmra.mxu0 %v336
    %v407 = vpop.f32.mrf.mxu0
    %v408 = vadd.f32 0.0, %v407
    %v409 = vpop.f32.mrf.mxu0
    %410 = vdwg.mxu0
    %v411 = vlaneseq
    %v412 = vshrl.u32 %v411, 7
    %v413 = vsub.s32 0, %v412
    %v414 = vrot.slane %v60, %v413
    %v416 = vsel %vm176, %v408, 0
    %418 = vmatprep.subr.mxu0 0.0
    %419 = vmatpush1.msra.mxu0 0.0
    %420 = vmatprep.subr.mxu0 0.0
    %421 = vmatpush1.msra.mxu0 0.0
    %422 = vmatprep.subr.mxu0 0.0
    %423 = vmatpush1.msra.mxu0 0.0
    %424 = vmatprep.subr.mxu0 0.0
    %425 = vmatpush1.msra.mxu0 0.0
    %426 = vmatprep.subr.mxu0 0.0
    %427 = vmatpush1.msra.mxu0 0.0
    %428 = vmatprep.subr.mxu0 0.0
    %429 = vmatpush1.msra.mxu0 0.0
    %430 = vmatprep.subr.mxu0 0.0
    %431 = vmatpush1.msra.mxu0 0.0
    %432 = vmatprep.subr.mxu0 0.0
    %433 = vmatpush1.msra.mxu0 0.0
    %434 = vmatprep.subr.mxu0 0.0
    %435 = vmatpush1.msra.mxu0 0.0
    %436 = vmatprep.subr.mxu0 0.0
    %437 = vmatpush1.msra.mxu0 0.0
    %438 = vmatprep.subr.mxu0 0.0
    %439 = vmatpush1.msra.mxu0 0.0
    %440 = vmatprep.subr.mxu0 0.0
    %441 = vmatpush1.msra.mxu0 0.0
    %442 = vmatprep.subr.mxu0 0.0
    %443 = vmatpush1.msra.mxu0 %v49
    %444 = vmatprep.subr.mxu0 0.0
    %445 = vmatpush1.msra.mxu0 %v48
    %446 = vmatprep.subr.mxu0 0.0
    %447 = vmatpush1.msra.mxu0 %v47
    %448 = vmatprep.subr.mxu0 0.0
    %449 = vmatpush1.msra.mxu0 %v46
    %450 = vmatprep.subr.mxu0 0.0
    %451 = vmatpush2.msra.mxu0 0.0
    %452 = vmatprep.subr.mxu0 0.0
    %453 = vmatpush2.msra.mxu0 0.0
    %454 = vmatprep.subr.mxu0 0.0
    %455 = vmatpush2.msra.mxu0 0.0
    %456 = vmatprep.subr.mxu0 0.0
    %457 = vmatpush2.msra.mxu0 0.0
    %458 = vmatprep.subr.mxu0 0.0
    %459 = vmatpush2.msra.mxu0 0.0
    %460 = vmatprep.subr.mxu0 0.0
    %461 = vmatpush2.msra.mxu0 0.0
    %462 = vmatprep.subr.mxu0 0.0
    %463 = vmatpush2.msra.mxu0 0.0
    %464 = vmatprep.subr.mxu0 0.0
    %465 = vmatpush2.msra.mxu0 0.0
    %466 = vmatprep.subr.mxu0 0.0
    %467 = vmatpush2.msra.mxu0 0.0
    %468 = vmatprep.subr.mxu0 0.0
    %469 = vmatpush2.msra.mxu0 0.0
    %470 = vmatprep.subr.mxu0 0.0
    %471 = vmatpush2.msra.mxu0 0.0
    %472 = vmatprep.subr.mxu0 0.0
    %473 = vmatpush2.msra.mxu0 0.0
    %474 = vmatprep.subr.mxu0 0.0
    %475 = vmatpush2.msra.mxu0 0.0
    %476 = vmatprep.subr.mxu0 0.0
    %477 = vmatpush2.msra.mxu0 0.0
    %478 = vmatprep.subr.mxu0 0.0
    %479 = vmatpush2.msra.mxu0 0.0
    %480 = vmatprep.subr.mxu0 0.0
    %481 = vmatpush2.msra.mxu0 0.0
    %482 = vmatprep.mubr.f32.mxu0 0.0
    %483 = vmatmul.mubr.f32.gmra.mxu0 %v416
    %v484 = vpop.f32.mrf.mxu0
    %v485 = vadd.f32 %v414, %v484
    %v486 = vpop.f32.mrf.mxu0
    %487 = vdwg.mxu0
    %v488 = vld [vmem:[%s3] sm:$0x3]
    %v489 = vlaneseq
    %v490 = vshrl.u32 %v489, 7
    %v491 = vsub.s32 0, %v490
    %v492 = vrot.slane %v61, %v491
    %v494 = vsel %vm176, %v488, 0
    %496 = vmatprep.subr.mxu0 0.0
    %497 = vmatpush1.msra.mxu0 0.0
    %498 = vmatprep.subr.mxu0 0.0
    %499 = vmatpush1.msra.mxu0 0.0
    %500 = vmatprep.subr.mxu0 0.0
    %501 = vmatpush1.msra.mxu0 0.0
    %502 = vmatprep.subr.mxu0 0.0
    %503 = vmatpush1.msra.mxu0 0.0
    %504 = vmatprep.subr.mxu0 0.0
    %505 = vmatpush1.msra.mxu0 0.0
    %506 = vmatprep.subr.mxu0 0.0
    %507 = vmatpush1.msra.mxu0 0.0
    %508 = vmatprep.subr.mxu0 0.0
    %509 = vmatpush1.msra.mxu0 0.0
    %510 = vmatprep.subr.mxu0 0.0
    %511 = vmatpush1.msra.mxu0 0.0
    %512 = vmatprep.subr.mxu0 0.0
    %513 = vmatpush1.msra.mxu0 0.0
    %514 = vmatprep.subr.mxu0 0.0
    %515 = vmatpush1.msra.mxu0 0.0
    %516 = vmatprep.subr.mxu0 0.0
    %517 = vmatpush1.msra.mxu0 0.0
    %518 = vmatprep.subr.mxu0 0.0
    %519 = vmatpush1.msra.mxu0 0.0
    %520 = vmatprep.subr.mxu0 0.0
    %521 = vmatpush1.msra.mxu0 %v53
    %522 = vmatprep.subr.mxu0 0.0
    %523 = vmatpush1.msra.mxu0 %v52
    %524 = vmatprep.subr.mxu0 0.0
    %525 = vmatpush1.msra.mxu0 %v51
    %526 = vmatprep.subr.mxu0 0.0
    %527 = vmatpush1.msra.mxu0 %v50
    %528 = vmatprep.subr.mxu0 0.0
    %529 = vmatpush2.msra.mxu0 0.0
    %530 = vmatprep.subr.mxu0 0.0
    %531 = vmatpush2.msra.mxu0 0.0
    %532 = vmatprep.subr.mxu0 0.0
    %533 = vmatpush2.msra.mxu0 0.0
    %534 = vmatprep.subr.mxu0 0.0
    %535 = vmatpush2.msra.mxu0 0.0
    %536 = vmatprep.subr.mxu0 0.0
    %537 = vmatpush2.msra.mxu0 0.0
    %538 = vmatprep.subr.mxu0 0.0
    %539 = vmatpush2.msra.mxu0 0.0
    %540 = vmatprep.subr.mxu0 0.0
    %541 = vmatpush2.msra.mxu0 0.0
    %542 = vmatprep.subr.mxu0 0.0
    %543 = vmatpush2.msra.mxu0 0.0
    %544 = vmatprep.subr.mxu0 0.0
    %545 = vmatpush2.msra.mxu0 0.0
    %546 = vmatprep.subr.mxu0 0.0
    %547 = vmatpush2.msra.mxu0 0.0
    %548 = vmatprep.subr.mxu0 0.0
    %549 = vmatpush2.msra.mxu0 0.0
    %550 = vmatprep.subr.mxu0 0.0
    %551 = vmatpush2.msra.mxu0 0.0
    %552 = vmatprep.subr.mxu0 0.0
    %553 = vmatpush2.msra.mxu0 0.0
    %554 = vmatprep.subr.mxu0 0.0
    %555 = vmatpush2.msra.mxu0 0.0
    %556 = vmatprep.subr.mxu0 0.0
    %557 = vmatpush2.msra.mxu0 0.0
    %558 = vmatprep.subr.mxu0 0.0
    %559 = vmatpush2.msra.mxu0 0.0
    %560 = vmatprep.mubr.f32.mxu0 0.0
    %561 = vmatmul.mubr.f32.gmra.mxu0 %v494
    %v562 = vpop.f32.mrf.mxu0
    %v563 = vadd.f32 %v492, %v562
    %v564 = vpop.f32.mrf.mxu0
    %565 = vdwg.mxu0
    %v566 = vadd.f32 %v485, %v563
    %v567 = vxor.u32 %v566, 2147483648
    %v568 = vmul.f32 %v567, 1.442695
    %v569 = vpow.pop %v568
    %v570 = vadd.f32 %v569, 1.0
    %v571 = vrcp.pop %v570
    %v572 = vmul.f32 1.0, %v571
    %574 = vrot.lane.b32.xlu0 %v563, 64
    %v575 = vpop.permute.xlu0 %574
    %v577 = vmul.f32 %v572, %v575
    %579 = vrot.lane.b32.xlu0 %v577, 64
    %v580 = vpop.permute.xlu0 %579
    %v582 = vadd.f32 %v485, %v580
    %v583 = vtanh.pop %v582
    %v584 = vsub.f32 1.0, %v572
    %586 = vrot.lane.b32.xlu0 %v583, 96
    %v587 = vpop.permute.xlu0 %586
    %v589 = vmul.f32 %v584, %v587
    %590 = vrot.lane.b32.xlu0 %v488, 32
    %v591 = vpop.permute.xlu0 %590
    %v593 = vmul.f32 %v572, %v591
    %v594 = vadd.f32 %v589, %v593
    %v595 = vmul.f32 %v594, %v594
    %597 = vrot.lane.b32.xlu0 %v595, 96
    %v598 = vpop.permute.xlu0 %597
    %vm600 = vcmask 254976
    %v601 = vsel %vm600, %v598, 0.0
    %602 = vadd.xlane.f32.xlu0 %v601
    %v603 = vpop.xlane.xlu0 %602
    %v604 = vrsqrt.pop %v603
    %v605 = vmul.f32 %v603, %v604
    %vm606 = vcmp.eq.f32.partialorder %v603, inf
    %v607 = vsel %vm606, %v603, %v605
    %vm608 = vcmp.eq.f32.partialorder %v603, 0.0
    %v609 = vand.u32 %v603, 2147483648
    %v610 = vsel %vm608, %v609, %v607
    %v611 = vadd.f32 %v610, 1e-10
    %v612 = vrcp.pop %v611
    %v613 = vmul.f32 %v594, %v612
    %615 = vrot.lane.b32.xlu0 %v594, 96
    %v616 = vpop.permute.xlu0 %615
    %v617 = vsel %vm176, %v616, 0
    %619 = vmatprep.subr.mxu0 0.0
    %620 = vmatpush1.msra.mxu0 0.0
    %621 = vmatprep.subr.mxu0 0.0
    %622 = vmatpush1.msra.mxu0 0.0
    %623 = vmatprep.subr.mxu0 0.0
    %624 = vmatpush1.msra.mxu0 0.0
    %625 = vmatprep.subr.mxu0 0.0
    %626 = vmatpush1.msra.mxu0 0.0
    %627 = vmatprep.subr.mxu0 0.0
    %628 = vmatpush1.msra.mxu0 0.0
    %629 = vmatprep.subr.mxu0 0.0
    %630 = vmatpush1.msra.mxu0 0.0
    %631 = vmatprep.subr.mxu0 0.0
    %632 = vmatpush1.msra.mxu0 0.0
    %633 = vmatprep.subr.mxu0 0.0
    %634 = vmatpush1.msra.mxu0 0.0
    %635 = vmatprep.subr.mxu0 0.0
    %636 = vmatpush1.msra.mxu0 0.0
    %637 = vmatprep.subr.mxu0 0.0
    %638 = vmatpush1.msra.mxu0 0.0
    %639 = vmatprep.subr.mxu0 0.0
    %640 = vmatpush1.msra.mxu0 0.0
    %641 = vmatprep.subr.mxu0 0.0
    %642 = vmatpush1.msra.mxu0 0.0
    %643 = vmatprep.subr.mxu0 0.0
    %644 = vmatpush1.msra.mxu0 %v53
    %645 = vmatprep.subr.mxu0 0.0
    %646 = vmatpush1.msra.mxu0 %v52
    %647 = vmatprep.subr.mxu0 0.0
    %648 = vmatpush1.msra.mxu0 %v51
    %649 = vmatprep.subr.mxu0 0.0
    %650 = vmatpush1.msra.mxu0 %v50
    %651 = vmatprep.subr.mxu0 0.0
    %652 = vmatpush2.msra.mxu0 0.0
    %653 = vmatprep.subr.mxu0 0.0
    %654 = vmatpush2.msra.mxu0 0.0
    %655 = vmatprep.subr.mxu0 0.0
    %656 = vmatpush2.msra.mxu0 0.0
    %657 = vmatprep.subr.mxu0 0.0
    %658 = vmatpush2.msra.mxu0 0.0
    %659 = vmatprep.subr.mxu0 0.0
    %660 = vmatpush2.msra.mxu0 0.0
    %661 = vmatprep.subr.mxu0 0.0
    %662 = vmatpush2.msra.mxu0 0.0
    %663 = vmatprep.subr.mxu0 0.0
    %664 = vmatpush2.msra.mxu0 0.0
    %665 = vmatprep.subr.mxu0 0.0
    %666 = vmatpush2.msra.mxu0 0.0
    %667 = vmatprep.subr.mxu0 0.0
    %668 = vmatpush2.msra.mxu0 0.0
    %669 = vmatprep.subr.mxu0 0.0
    %670 = vmatpush2.msra.mxu0 0.0
    %671 = vmatprep.subr.mxu0 0.0
    %672 = vmatpush2.msra.mxu0 0.0
    %673 = vmatprep.subr.mxu0 0.0
    %674 = vmatpush2.msra.mxu0 0.0
    %675 = vmatprep.subr.mxu0 0.0
    %676 = vmatpush2.msra.mxu0 0.0
    %677 = vmatprep.subr.mxu0 0.0
    %678 = vmatpush2.msra.mxu0 0.0
    %679 = vmatprep.subr.mxu0 0.0
    %680 = vmatpush2.msra.mxu0 0.0
    %681 = vmatprep.subr.mxu0 0.0
    %682 = vmatpush2.msra.mxu0 0.0
    %683 = vmatprep.mubr.f32.mxu0 0.0
    %684 = vmatmul.mubr.f32.gmra.mxu0 %v617
    %v685 = vpop.f32.mrf.mxu0
    %v686 = vadd.f32 %v492, %v685
    %v687 = vpop.f32.mrf.mxu0
    %688 = vdwg.mxu0
    %v689 = vadd.f32 %v485, %v686
    %v690 = vxor.u32 %v689, 2147483648
    %v691 = vmul.f32 %v690, 1.442695
    %v692 = vpow.pop %v691
    %v693 = vadd.f32 %v692, 1.0
    %v694 = vrcp.pop %v693
    %v695 = vmul.f32 1.0, %v694
    %697 = vrot.lane.b32.xlu0 %v686, 64
    %v698 = vpop.permute.xlu0 %697
    %v700 = vmul.f32 %v695, %v698
    %702 = vrot.lane.b32.xlu0 %v700, 64
    %v703 = vpop.permute.xlu0 %702
    %v705 = vadd.f32 %v485, %v703
    %v706 = vtanh.pop %v705
    %v707 = vsub.f32 1.0, %v695
    %709 = vrot.lane.b32.xlu0 %v706, 96
    %v710 = vpop.permute.xlu0 %709
    %v712 = vmul.f32 %v707, %v710
    %v713 = vmul.f32 %v695, %v594
    %v714 = vadd.f32 %v712, %v713
    %v715 = vmul.f32 %v714, %v714
    %717 = vrot.lane.b32.xlu0 %v715, 96
    %v718 = vpop.permute.xlu0 %717
    %v720 = vsel %vm600, %v718, 0.0
    %721 = vadd.xlane.f32.xlu0 %v720
    %v722 = vpop.xlane.xlu0 %721
    %v723 = vrsqrt.pop %v722
    %v724 = vmul.f32 %v722, %v723
    %vm725 = vcmp.eq.f32.partialorder %v722, inf
    %v726 = vsel %vm725, %v722, %v724
    %vm727 = vcmp.eq.f32.partialorder %v722, 0.0
    %v728 = vand.u32 %v722, 2147483648
    %v729 = vsel %vm727, %v728, %v726
    %v730 = vadd.f32 %v729, 1e-10
    %v731 = vrcp.pop %v730
    %v732 = vmul.f32 %v714, %v731
    %v733 = vmul.f32 %v613, %v732
    %735 = vrot.lane.b32.xlu0 %v733, 96
    %v736 = vpop.permute.xlu0 %735
    %v738 = vsel %vm600, %v736, 0.0
    %739 = vadd.xlane.f32.xlu0 %v738
    %v740 = vpop.xlane.xlu0 %739
    %vm741 = vcmask 1024
    %v742 = vsel %vm741, %v740, 0.0
    %743 = vadd.xlane.f32.xlu0 %v742
    %v744 = vpop.xlane.xlu0 %743
    %v745 = vrot.slane %v744, 4
    %v746 = vadd.f32 %v744, %v745
    %v747 = vrot.slane %v746, 2
    %v748 = vadd.f32 %v746, %v747
    %v749 = vrot.slane %v748, 1
    %v750 = vadd.f32 %v748, %v749
    %s751 = vtos %v750
    %v752 = vrcp.pop 2.0
    %s753 = vtos %v752
    %s754 = smul.f32 %s751, %s753
    %s755 = smul.f32 %s754, %s754
    %s756 = sadd.f32 %s755, 0.0
    %s757 = scalar_lea.smem [#allocation2], 0
    %758 = sst [smem:[%s757]] %s756
    %v759 = vld [vmem:[%s6 + $0x1d0] sm:$0xff]
    %v760 = vld [vmem:[%s6 + $0x1d8] sm:$0xff]
    %762 = vrot.lane.b32.xlu0 %v714, 96
    %v763 = vpop.permute.xlu0 %762
    %vm764 = vcmask 15360
    %v766 = vsel %vm764, %v760, 0
    %vm768 = vcmask 1041408
    %v769 = vsel %vm768, %v763, 0
    %771 = vmatprep.subr.mxu0 0.0
    %772 = vmatpush1.msra.mxu0 0.0
    %773 = vmatprep.subr.mxu0 0.0
    %774 = vmatpush1.msra.mxu0 0.0
    %775 = vmatprep.subr.mxu0 0.0
    %776 = vmatpush1.msra.mxu0 0.0
    %777 = vmatprep.subr.mxu0 0.0
    %778 = vmatpush1.msra.mxu0 0.0
    %779 = vmatprep.subr.mxu0 0.0
    %780 = vmatpush1.msra.mxu0 0.0
    %781 = vmatprep.subr.mxu0 0.0
    %782 = vmatpush1.msra.mxu0 0.0
    %783 = vmatprep.subr.mxu0 0.0
    %784 = vmatpush1.msra.mxu0 0.0
    %785 = vmatprep.subr.mxu0 0.0
    %786 = vmatpush1.msra.mxu0 0.0
    %787 = vmatprep.subr.mxu0 0.0
    %788 = vmatpush1.msra.mxu0 0.0
    %789 = vmatprep.subr.mxu0 0.0
    %790 = vmatpush1.msra.mxu0 0.0
    %791 = vmatprep.subr.mxu0 0.0
    %792 = vmatpush1.msra.mxu0 0.0
    %793 = vmatprep.subr.mxu0 0.0
    %794 = vmatpush1.msra.mxu0 0.0
    %795 = vmatprep.subr.mxu0 0.0
    %796 = vmatpush1.msra.mxu0 0.0
    %797 = vmatprep.subr.mxu0 0.0
    %798 = vmatpush1.msra.mxu0 0.0
    %799 = vmatprep.subr.mxu0 0.0
    %800 = vmatpush1.msra.mxu0 0.0
    %801 = vmatprep.subr.mxu0 0.0
    %802 = vmatpush1.msra.mxu0 %v769
    %803 = vmatprep.subr.mxu0 0.0
    %804 = vmatpush2.msra.mxu0 0.0
    %805 = vmatprep.subr.mxu0 0.0
    %806 = vmatpush2.msra.mxu0 0.0
    %807 = vmatprep.subr.mxu0 0.0
    %808 = vmatpush2.msra.mxu0 0.0
    %809 = vmatprep.subr.mxu0 0.0
    %810 = vmatpush2.msra.mxu0 0.0
    %811 = vmatprep.subr.mxu0 0.0
    %812 = vmatpush2.msra.mxu0 0.0
    %813 = vmatprep.subr.mxu0 0.0
    %814 = vmatpush2.msra.mxu0 0.0
    %815 = vmatprep.subr.mxu0 0.0
    %816 = vmatpush2.msra.mxu0 0.0
    %817 = vmatprep.subr.mxu0 0.0
    %818 = vmatpush2.msra.mxu0 0.0
    %819 = vmatprep.subr.mxu0 0.0
    %820 = vmatpush2.msra.mxu0 0.0
    %821 = vmatprep.subr.mxu0 0.0
    %822 = vmatpush2.msra.mxu0 0.0
    %823 = vmatprep.subr.mxu0 0.0
    %824 = vmatpush2.msra.mxu0 0.0
    %825 = vmatprep.subr.mxu0 0.0
    %826 = vmatpush2.msra.mxu0 0.0
    %827 = vmatprep.subr.mxu0 0.0
    %828 = vmatpush2.msra.mxu0 0.0
    %829 = vmatprep.subr.mxu0 0.0
    %830 = vmatpush2.msra.mxu0 0.0
    %831 = vmatprep.subr.mxu0 0.0
    %832 = vmatpush2.msra.mxu0 0.0
    %833 = vmatprep.subr.mxu0 0.0
    %834 = vmatpush2.msra.mxu0 0.0
    %835 = vmatprep.mubr.f32.mxu0 0.0
    %836 = vmatmul.mubr.f32.gmra.mxu0 %v766
    %v837 = vpop.f32.mrf.mxu0
    %v838 = vadd.f32 0.0, %v837
    %v839 = vpop.f32.mrf.mxu0
    %840 = vdwg.mxu0
    %v842 = vsel %vm764, %v759, 0
    %v844 = vsel %vm768, %v616, 0
    %846 = vmatprep.subr.mxu0 0.0
    %847 = vmatpush1.msra.mxu0 0.0
    %848 = vmatprep.subr.mxu0 0.0
    %849 = vmatpush1.msra.mxu0 0.0
    %850 = vmatprep.subr.mxu0 0.0
    %851 = vmatpush1.msra.mxu0 0.0
    %852 = vmatprep.subr.mxu0 0.0
    %853 = vmatpush1.msra.mxu0 0.0
    %854 = vmatprep.subr.mxu0 0.0
    %855 = vmatpush1.msra.mxu0 0.0
    %856 = vmatprep.subr.mxu0 0.0
    %857 = vmatpush1.msra.mxu0 0.0
    %858 = vmatprep.subr.mxu0 0.0
    %859 = vmatpush1.msra.mxu0 0.0
    %860 = vmatprep.subr.mxu0 0.0
    %861 = vmatpush1.msra.mxu0 0.0
    %862 = vmatprep.subr.mxu0 0.0
    %863 = vmatpush1.msra.mxu0 0.0
    %864 = vmatprep.subr.mxu0 0.0
    %865 = vmatpush1.msra.mxu0 0.0
    %866 = vmatprep.subr.mxu0 0.0
    %867 = vmatpush1.msra.mxu0 0.0
    %868 = vmatprep.subr.mxu0 0.0
    %869 = vmatpush1.msra.mxu0 0.0
    %870 = vmatprep.subr.mxu0 0.0
    %871 = vmatpush1.msra.mxu0 0.0
    %872 = vmatprep.subr.mxu0 0.0
    %873 = vmatpush1.msra.mxu0 0.0
    %874 = vmatprep.subr.mxu0 0.0
    %875 = vmatpush1.msra.mxu0 0.0
    %876 = vmatprep.subr.mxu0 0.0
    %877 = vmatpush1.msra.mxu0 %v844
    %878 = vmatprep.subr.mxu0 0.0
    %879 = vmatpush2.msra.mxu0 0.0
    %880 = vmatprep.subr.mxu0 0.0
    %881 = vmatpush2.msra.mxu0 0.0
    %882 = vmatprep.subr.mxu0 0.0
    %883 = vmatpush2.msra.mxu0 0.0
    %884 = vmatprep.subr.mxu0 0.0
    %885 = vmatpush2.msra.mxu0 0.0
    %886 = vmatprep.subr.mxu0 0.0
    %887 = vmatpush2.msra.mxu0 0.0
    %888 = vmatprep.subr.mxu0 0.0
    %889 = vmatpush2.msra.mxu0 0.0
    %890 = vmatprep.subr.mxu0 0.0
    %891 = vmatpush2.msra.mxu0 0.0
    %892 = vmatprep.subr.mxu0 0.0
    %893 = vmatpush2.msra.mxu0 0.0
    %894 = vmatprep.subr.mxu0 0.0
    %895 = vmatpush2.msra.mxu0 0.0
    %896 = vmatprep.subr.mxu0 0.0
    %897 = vmatpush2.msra.mxu0 0.0
    %898 = vmatprep.subr.mxu0 0.0
    %899 = vmatpush2.msra.mxu0 0.0
    %900 = vmatprep.subr.mxu0 0.0
    %901 = vmatpush2.msra.mxu0 0.0
    %902 = vmatprep.subr.mxu0 0.0
    %903 = vmatpush2.msra.mxu0 0.0
    %904 = vmatprep.subr.mxu0 0.0
    %905 = vmatpush2.msra.mxu0 0.0
    %906 = vmatprep.subr.mxu0 0.0
    %907 = vmatpush2.msra.mxu0 0.0
    %908 = vmatprep.subr.mxu0 0.0
    %909 = vmatpush2.msra.mxu0 0.0
    %910 = vmatprep.mubr.f32.mxu0 0.0
    %911 = vmatmul.mubr.f32.gmra.mxu0 %v842
    %v912 = vpop.f32.mrf.mxu0
    %v913 = vadd.f32 %v838, %v912
    %v914 = vpop.f32.mrf.mxu0
    %915 = vdwg.mxu0
    %v917 = vsel %vm176, %v913, 0
    %919 = vmatprep.subr.mxu0 0.0
    %920 = vmatpush1.msra.mxu0 0.0
    %921 = vmatprep.subr.mxu0 0.0
    %922 = vmatpush1.msra.mxu0 0.0
    %923 = vmatprep.subr.mxu0 0.0
    %924 = vmatpush1.msra.mxu0 0.0
    %925 = vmatprep.subr.mxu0 0.0
    %926 = vmatpush1.msra.mxu0 0.0
    %927 = vmatprep.subr.mxu0 0.0
    %928 = vmatpush1.msra.mxu0 0.0
    %929 = vmatprep.subr.mxu0 0.0
    %930 = vmatpush1.msra.mxu0 0.0
    %931 = vmatprep.subr.mxu0 0.0
    %932 = vmatpush1.msra.mxu0 0.0
    %933 = vmatprep.subr.mxu0 0.0
    %934 = vmatpush1.msra.mxu0 0.0
    %935 = vmatprep.subr.mxu0 0.0
    %936 = vmatpush1.msra.mxu0 0.0
    %937 = vmatprep.subr.mxu0 0.0
    %938 = vmatpush1.msra.mxu0 0.0
    %939 = vmatprep.subr.mxu0 0.0
    %940 = vmatpush1.msra.mxu0 0.0
    %941 = vmatprep.subr.mxu0 0.0
    %942 = vmatpush1.msra.mxu0 0.0
    %943 = vmatprep.subr.mxu0 0.0
    %944 = vmatpush1.msra.mxu0 %v57
    %945 = vmatprep.subr.mxu0 0.0
    %946 = vmatpush1.msra.mxu0 %v56
    %947 = vmatprep.subr.mxu0 0.0
    %948 = vmatpush1.msra.mxu0 %v55
    %949 = vmatprep.subr.mxu0 0.0
    %950 = vmatpush1.msra.mxu0 %v54
    %951 = vmatprep.subr.mxu0 0.0
    %952 = vmatpush2.msra.mxu0 0.0
    %953 = vmatprep.subr.mxu0 0.0
    %954 = vmatpush2.msra.mxu0 0.0
    %955 = vmatprep.subr.mxu0 0.0
    %956 = vmatpush2.msra.mxu0 0.0
    %957 = vmatprep.subr.mxu0 0.0
    %958 = vmatpush2.msra.mxu0 0.0
    %959 = vmatprep.subr.mxu0 0.0
    %960 = vmatpush2.msra.mxu0 0.0
    %961 = vmatprep.subr.mxu0 0.0
    %962 = vmatpush2.msra.mxu0 0.0
    %963 = vmatprep.subr.mxu0 0.0
    %964 = vmatpush2.msra.mxu0 0.0
    %965 = vmatprep.subr.mxu0 0.0
    %966 = vmatpush2.msra.mxu0 0.0
    %967 = vmatprep.subr.mxu0 0.0
    %968 = vmatpush2.msra.mxu0 0.0
    %969 = vmatprep.subr.mxu0 0.0
    %970 = vmatpush2.msra.mxu0 0.0
    %971 = vmatprep.subr.mxu0 0.0
    %972 = vmatpush2.msra.mxu0 0.0
    %973 = vmatprep.subr.mxu0 0.0
    %974 = vmatpush2.msra.mxu0 0.0
    %975 = vmatprep.subr.mxu0 0.0
    %976 = vmatpush2.msra.mxu0 0.0
    %977 = vmatprep.subr.mxu0 0.0
    %978 = vmatpush2.msra.mxu0 0.0
    %979 = vmatprep.subr.mxu0 0.0
    %980 = vmatpush2.msra.mxu0 0.0
    %981 = vmatprep.subr.mxu0 0.0
    %982 = vmatpush2.msra.mxu0 0.0
    %983 = vmatprep.mubr.f32.mxu0 0.0
    %984 = vmatmul.mubr.f32.gmra.mxu0 %v917
    %v985 = vpop.f32.mrf.mxu0
    %v986 = vadd.f32 0.0, %v985
    %v987 = vpop.f32.mrf.mxu0
    %988 = vdwg.mxu0
    %v989 = vld [vmem:[%s5] sm:$0xff]
    %v990 = vld [vmem:[%s5 + $0x8] sm:$0xff]
    %v991 = vadd.f32 %v989, 1e-10
    %v992 = vadd.f32 %v990, 1e-10
    %993 = vst [vmem:[%s11] sm:$0xff] %v991
    %994 = vst [vmem:[%s11 + $0x8] sm:$0xff] %v992
    %v995 = vld [vmem:[%s4] sm:$0xff]
    %v996 = vld [vmem:[%s4 + $0x8] sm:$0xff]
    %v997 = vrcp.pop %v991
    %v998 = vrcp.pop %v992
    %v999 = vmul.f32 %v995, %v997
    %v1000 = vmul.f32 %v996, %v998
    %v1001 = vmax.f32 %v999, 0.0
    %v1002 = vmax.f32 %v1000, 0.0
    %v1003 = vmin.f32 %v1001, 5.0
    %v1004 = vmin.f32 %v1002, 5.0
    %1005 = vst [vmem:[%s7] sm:$0xff] %v1003
    %1006 = vst [vmem:[%s7 + $0x8] sm:$0xff] %v1004
    %v1007 = vadd.f32 %v991, 1.0
    %v1008 = vlog2.pop %v1007
    %v1009 = vmul.f32 %v1008, 0.6931472
    %v1010 = vmul.f32 -0.5, %v991
    %v1011 = vadd.f32 %v1010, 1.0
    %v1012 = vmul.f32 %v1011, %v991
    %v1013 = vand.u32 2147483647, %v991
    %vm1014 = vcmp.lt.f32.partialorder %v1013, 0.0004427343
    %v1015 = vsel %vm1014, %v1012, %v1009
    %v1016 = vadd.f32 %v992, 1.0
    %v1017 = vlog2.pop %v1016
    %v1018 = vmul.f32 %v1017, 0.6931472
    %v1019 = vmul.f32 -0.5, %v992
    %v1020 = vadd.f32 %v1019, 1.0
    %v1021 = vmul.f32 %v1020, %v992
    %v1022 = vand.u32 2147483647, %v992
    %vm1023 = vcmp.lt.f32.partialorder %v1022, 0.0004427343
    %v1024 = vsel %vm1023, %v1021, %v1018
    %v1025 = vmax.f32 %v1015, 0.001
    %v1026 = vmax.f32 %v1024, 0.001
    %v1027 = vmin.f32 %v1025, 10.0
    %v1028 = vmin.f32 %v1026, 10.0
    %1029 = vst [vmem:[%s8] sm:$0xff] %v1027
    %1030 = vst [vmem:[%s8 + $0x8] sm:$0xff] %v1028
    %v1031 = vlog2.pop %v991
    %v1032 = vmul.f32 %v1031, 0.6931472
    %v1033 = vlog2.pop %v992
    %v1034 = vmul.f32 %v1033, 0.6931472
    %s1036 = vtos %v62
    %v1037 = vstv %s1036
    %v1039 = vmul.f32 %v1037, %v1032
    %v1040 = vmul.f32 %v1037, %v1034
    %1042 = vset.pattern.permute.xlu0 0
    %1043 = vperm.xlu0 %1042, %v986
    %v1044 = vpop.permute.xlu0 %1043
    %v1046 = vadd.f32 %v1039, %v1044
    %v1047 = vadd.f32 %v1040, %v1044
    %1048 = vrot.lane.b32.xlu0 %v62, 127
    %v1049 = vpop.permute.xlu0 %1048
    %s1050 = vtos %v1049
    %v1051 = vstv %s1050
    %v1053 = vadd.f32 %v1046, %v1051
    %v1054 = vadd.f32 %v1047, %v1051
    %v1055 = vxor.u32 %v1053, 2147483648
    %v1056 = vxor.u32 %v1054, 2147483648
    %v1057 = vmul.f32 %v1055, 1.442695
    %v1058 = vpow.pop %v1057
    %v1059 = vmul.f32 %v1056, 1.442695
    %v1060 = vpow.pop %v1059
    %v1061 = vadd.f32 %v1058, 1.0
    %v1062 = vadd.f32 %v1060, 1.0
    %v1063 = vrcp.pop %v1061
    %v1064 = vmul.f32 1.0, %v1063
    %v1065 = vrcp.pop %v1062
    %v1066 = vmul.f32 1.0, %v1065
    %1067 = vst [vmem:[%s9] sm:$0xff] %v1064
    %1068 = vst [vmem:[%s9 + $0x8] sm:$0xff] %v1066
    %v1069 = vmul.f32 %v991, %v1064
    %v1070 = vmul.f32 %v992, %v1066
    %1071 = vst [vmem:[%s10] sm:$0xff] %v1069
    %1072 = vst [vmem:[%s10 + $0x8] sm:$0xff] %v1070
    %v1073 = vadd.f32 %v1069, 1e-10
    %v1074 = vadd.f32 %v1070, 1e-10
    %v1075 = vlog2.pop %v1073
    %v1076 = vmul.f32 %v1075, 0.6931472
    %v1077 = vlog2.pop %v1074
    %v1078 = vmul.f32 %v1077, 0.6931472
    %v1079 = vlaneseq
    %v1080 = vshrl.u32 %v1079, 7
    %v1081 = vsub.s32 0, %v1080
    %v1082 = vrot.slane %v95, %v1081
    %1083 = vmatprep.subr.mxu0 0.0
    %1084 = vmatpush1.msra.mxu0 %v78
    %1085 = vmatprep.subr.mxu0 0.0
    %1086 = vmatpush1.msra.mxu0 %v77
    %1087 = vmatprep.subr.mxu0 0.0
    %1088 = vmatpush1.msra.mxu0 %v76
    %1089 = vmatprep.subr.mxu0 0.0
    %1090 = vmatpush1.msra.mxu0 %v75
    %1091 = vmatprep.subr.mxu0 0.0
    %1092 = vmatpush1.msra.mxu0 %v74
    %1093 = vmatprep.subr.mxu0 0.0
    %1094 = vmatpush1.msra.mxu0 %v73
    %1095 = vmatprep.subr.mxu0 0.0
    %1096 = vmatpush1.msra.mxu0 %v72
    %1097 = vmatprep.subr.mxu0 0.0
    %1098 = vmatpush1.msra.mxu0 %v71
    %1099 = vmatprep.subr.mxu0 0.0
    %1100 = vmatpush1.msra.mxu0 %v70
    %1101 = vmatprep.subr.mxu0 0.0
    %1102 = vmatpush1.msra.mxu0 %v69
    %1103 = vmatprep.subr.mxu0 0.0
    %1104 = vmatpush1.msra.mxu0 %v68
    %1105 = vmatprep.subr.mxu0 0.0
    %1106 = vmatpush1.msra.mxu0 %v67
    %1107 = vmatprep.subr.mxu0 0.0
    %1108 = vmatpush1.msra.mxu0 %v66
    %1109 = vmatprep.subr.mxu0 0.0
    %1110 = vmatpush1.msra.mxu0 %v65
    %1111 = vmatprep.subr.mxu0 0.0
    %1112 = vmatpush1.msra.mxu0 %v64
    %1113 = vmatprep.subr.mxu0 0.0
    %1114 = vmatpush1.msra.mxu0 %v63
    %1115 = vmatprep.subr.mxu0 0.0
    %1116 = vmatpush2.msra.mxu0 %v94
    %1117 = vmatprep.subr.mxu0 0.0
    %1118 = vmatpush2.msra.mxu0 %v93
    %1119 = vmatprep.subr.mxu0 0.0
    %1120 = vmatpush2.msra.mxu0 %v92
    %1121 = vmatprep.subr.mxu0 0.0
    %1122 = vmatpush2.msra.mxu0 %v91
    %1123 = vmatprep.subr.mxu0 0.0
    %1124 = vmatpush2.msra.mxu0 %v90
    %1125 = vmatprep.subr.mxu0 0.0
    %1126 = vmatpush2.msra.mxu0 %v89
    %1127 = vmatprep.subr.mxu0 0.0
    %1128 = vmatpush2.msra.mxu0 %v88
    %1129 = vmatprep.subr.mxu0 0.0
    %1130 = vmatpush2.msra.mxu0 %v87
    %1131 = vmatprep.subr.mxu0 0.0
    %1132 = vmatpush2.msra.mxu0 %v86
    %1133 = vmatprep.subr.mxu0 0.0
    %1134 = vmatpush2.msra.mxu0 %v85
    %1135 = vmatprep.subr.mxu0 0.0
    %1136 = vmatpush2.msra.mxu0 %v84
    %1137 = vmatprep.subr.mxu0 0.0
    %1138 = vmatpush2.msra.mxu0 %v83
    %1139 = vmatprep.subr.mxu0 0.0
    %1140 = vmatpush2.msra.mxu0 %v82
    %1141 = vmatprep.subr.mxu0 0.0
    %1142 = vmatpush2.msra.mxu0 %v81
    %1143 = vmatprep.subr.mxu0 0.0
    %1144 = vmatpush2.msra.mxu0 %v80
    %1145 = vmatprep.subr.mxu0 0.0
    %1146 = vmatpush2.msra.mxu0 %v79
    %1147 = vmatprep.mubr.f32.mxu0 %v1078
    %1148 = vmatmul.mubr.f32.gmra.mxu0 %v1076
    %v1149 = vpop.f32.mrf.mxu0
    %v1150 = vadd.f32 %v1082, %v1149
    %v1151 = vpop.f32.mrf.mxu0
    %1152 = vdwg.mxu0
    %1153 = vst [vmem:[%s12] sm:$0xff] %v1150
    // Predicated region
    $region30: #{forward.1} parent=1 // pred_check
      _
    $region31: #{forward.1} parent=1 // pred_check_branch
      %1155 = sbr.rel (0) target = $region33
    $region32: #{forward.1} parent=1 // pred_region
      _
    $region33: #{forward.1} parent=1 // pred_fallthru
      _
    // Predicated region
    $region34: #{forward.1} parent=1 // pred_check
      _
    $region35: #{forward.1} parent=1 // pred_check_branch
      %1157 = sbr.rel (0) target = $region37
    $region36: #{forward.1} parent=1 // pred_region
      _
    $region37: #{forward.1} parent=1 // pred_fallthru
      _
    // Predicated region
    $region38: #{forward.1} parent=1 // pred_check
      _
    $region39: #{forward.1} parent=1 // pred_check_branch
      %1159 = sbr.rel (0) target = $region41
    $region40: #{forward.1} parent=1 // pred_region
      _
    $region41: #{forward.1} parent=1 // pred_fallthru
      _
    // Predicated region
    $region42: #{forward.1} parent=1 // pred_check
      _
    $region43: #{forward.1} parent=1 // pred_check_branch
      %1161 = sbr.rel (0) target = $region45
    $region44: #{forward.1} parent=1 // pred_region
      _
    $region45: #{forward.1} parent=1 // pred_fallthru
      _
    // Predicated region
    $region46: #{forward.1} parent=1 // pred_check
      _
    $region47: #{forward.1} parent=1 // pred_check_branch
      %1163 = sbr.rel (0) target = $region49
    $region48: #{forward.1} parent=1 // pred_region
      _
    $region49: #{forward.1} parent=1 // pred_fallthru
      _
    // Predicated region
    $region50: #{forward.1} parent=1 // pred_check
      _
    $region51: #{forward.1} parent=1 // pred_check_branch
      %1165 = sbr.rel (0) target = $region53
    $region52: #{forward.1} parent=1 // pred_region
      _
    $region53: #{forward.1} parent=1 // pred_fallthru
      _
    // Predicated region
    $region54: #{forward.1} parent=1 // pred_check
      _
    $region55: #{forward.1} parent=1 // pred_check_branch
      %1167 = sbr.rel (0) target = $region57
    $region56: #{forward.1} parent=1 // pred_region
      %s1169 = ssub.s32 16, 16
      %1170 = vsyncadd [#allocation3], %s1169
      %1173 = dma.smem_to_hbm [#allocation2], 16, %s13, [#allocation3]
    $region57: #{forward.1} parent=1 // pred_fallthru
      _
    // Predicated region
    $region58: #{forward.1} parent=1 // pred_check
      _
    $region59: #{forward.1} parent=1 // pred_check_branch
      %1175 = sbr.rel (0) target = $region61
    $region60: #{forward.1} parent=1 // pred_region
      _
    $region61: #{forward.1} parent=1 // pred_fallthru
      _
    // Predicated region
    $region62: #{forward.1} parent=1 // pred_check
      _
    $region63: #{forward.1} parent=1 // pred_check_branch
      %1177 = sbr.rel (0) target = $region65
    $region64: #{forward.1} parent=1 // pred_region
      _
    $region65: #{forward.1} parent=1 // pred_fallthru
      _
    // Predicated region
    $region66: #{forward.1} parent=1 // pred_check
      _
    $region67: #{forward.1} parent=1 // pred_check_branch
      %1179 = sbr.rel (0) target = $region69
    $region68: #{forward.1} parent=1 // pred_region
      _
    $region69: #{forward.1} parent=1 // pred_fallthru
      _
    // Predicated region
    $region70: #{forward.1} parent=1 // pred_check
      _
    $region71: #{forward.1} parent=1 // pred_check_branch
      %1181 = sbr.rel (0) target = $region73
    $region72: #{forward.1} parent=1 // pred_region
      _
    $region73: #{forward.1} parent=1 // pred_fallthru
      _
    // Predicated region
    $region74: #{forward.1} parent=1 // pred_check
      _
    $region75: #{forward.1} parent=1 // pred_check_branch
      %1183 = sbr.rel (0) target = $region77
    $region76: #{forward.1} parent=1 // pred_region
      _
    $region77: #{forward.1} parent=1 // pred_fallthru
      _
    // Predicated region
    $region78: #{forward.1} parent=1 // pred_check
      _
    $region79: #{forward.1} parent=1 // pred_check_branch
      %1185 = sbr.rel (0) target = $region81
    $region80: #{forward.1} parent=1 // pred_region
      _
    $region81: #{forward.1} parent=1 // pred_fallthru
      _
    // Predicated region
    $region82: #{forward.1} parent=1 // pred_check
      _
    $region83: #{forward.1} parent=1 // pred_check_branch
      %1187 = sbr.rel (0) target = $region85
    $region84: #{forward.1} parent=1 // pred_region
      %1188 = dma.done [#allocation3], 16
    $region85: #{forward.1} parent=1 // pred_fallthru
      _
    %1189 = sfence
    %1190 = vsyncpa [#allocation3], 1

</llo_original>
